<compile_context>
chip_gen: v7x
topology: tpu7x:2x2x1
jax: 0.10.0
libtpu: 0.0.40
codegen_flags: <defaults>
</compile_context>

<pallas_src>
import functools

import jax
import jax.numpy as jnp
import numpy as np
from jax import lax
from jax.experimental import pallas as pl
from jax.experimental.pallas import tpu as pltpu


def _gru_recurrence_kernel(gx_ref, w_hh_ref, b_hh_ref, h_out_ref, h_ref, *, time_block):
    """One grid step: `time_block` GRU updates for one batch chunk.

    gx_ref:    (Tb, 3, Bc, H)  precomputed x @ W_ih + b_ih, gate-major (r, z, n)
    w_hh_ref:  (3, H, H)       per-gate hidden weights (transposed)
    b_hh_ref:  (3, 1, H)       per-gate hidden biases
    h_out_ref: (Tb, Bc, H)     hidden states for every timestep in this block
    h_ref:     (Bc, H)         VMEM scratch: hidden state carried across time blocks
    """
    t_blk = pl.program_id(1)

    # h_0 = zeros at the start of every batch chunk's time loop (PyTorch default).
    @pl.when(t_blk == 0)
    def _():
        h_ref[...] = jnp.zeros_like(h_ref)

    # Hoist weight/bias loads out of the per-timestep loop.
    w_r = w_hh_ref[0]
    w_z = w_hh_ref[1]
    w_n = w_hh_ref[2]
    b_r = b_hh_ref[0]
    b_z = b_hh_ref[1]
    b_n = b_hh_ref[2]

    def step(i, h):
        gx_t = gx_ref[i]                                                  # (3, Bc, H)
        gh_r = jnp.dot(h, w_r, preferred_element_type=jnp.float32) + b_r  # (Bc, H)
        gh_z = jnp.dot(h, w_z, preferred_element_type=jnp.float32) + b_z
        gh_n = jnp.dot(h, w_n, preferred_element_type=jnp.float32) + b_n
        r = jax.nn.sigmoid(gx_t[0] + gh_r)
        z = jax.nn.sigmoid(gx_t[1] + gh_z)
        n = jnp.tanh(gx_t[2] + r * gh_n)        # PyTorch: n = tanh(x_n + r*(h@W_hn + b_hn))
        h_new = (1.0 - z) * n + z * h
        h_out_ref[i] = h_new
        return h_new

    h_final = lax.fori_loop(0, time_block, step, h_ref[...], unroll=True)
    h_ref[...] = h_final


def rssm_forward(x, params, *, time_block=16):
    """x: (B, T, input_size) float32. Returns (B, T, output_dim) float32."""
    w_ih, w_hh, b_ih, b_hh, w_fc, b_fc = params
    B, T, I = x.shape
    H = w_hh.shape[-1]
    O = w_fc.shape[-1]

    # ---- pad batch to a sublane multiple (8) and time to a multiple of Tb ----
    B_pad = (B + 7) // 8 * 8
    Tb = min(time_block, T)
    T_pad = (T + Tb - 1) // Tb * Tb
    x_pad = jnp.pad(x, ((0, B_pad - B), (0, T_pad - T), (0, 0)))

    # Split the batch into chunks along a "parallel" grid axis when big enough,
    # so v7x megacore can run independent recurrences on both TensorCores.
    n_b_chunks = 2 if (B_pad >= 16 and B_pad % 16 == 0) else 1
    Bc = B_pad // n_b_chunks

    # ---- hoisted, non-recurrent input projection (one batched matmul) --------
    # gx[t, g, b, :] = x[b, t] @ W_ih[g] + b_ih[g]   (time-major, gate-major)
    gx = jnp.einsum('bti,gih->tgbh', x_pad, w_ih) + b_ih[None, :, None, :]
    gx = gx.astype(jnp.float32)

    grid = (n_b_chunks, T_pad // Tb)
    kernel = functools.partial(_gru_recurrence_kernel, time_block=Tb)

    h_tm = pl.pallas_call(
        kernel,
        out_shape=jax.ShapeDtypeStruct((T_pad, B_pad, H), jnp.float32),
        grid_spec=pltpu.PrefetchScalarGridSpec(
            num_scalar_prefetch=0,
            grid=grid,
            in_specs=[
                pl.BlockSpec((Tb, 3, Bc, H), lambda b, t: (t, 0, b, 0)),  # gx
                pl.BlockSpec((3, H, H), lambda b, t: (0, 0, 0)),          # W_hh (per-gate)
                pl.BlockSpec((3, 1, H), lambda b, t: (0, 0, 0)),          # b_hh (per-gate)
            ],
            out_specs=pl.BlockSpec((Tb, Bc, H), lambda b, t: (t, b, 0)),
            scratch_shapes=[pltpu.VMEM((Bc, H), jnp.float32)],            # carried h
        ),
        compiler_params=pltpu.CompilerParams(
            # batch chunks are independent ("parallel"); time is a true recurrence
            # and must stay "arbitrary" (h lives in scratch across time blocks).
            dimension_semantics=("parallel", "arbitrary"),
        ),
    )(gx, w_hh, b_hh[:, None, :])

    # ---- hoisted, non-recurrent output Linear (one batched matmul) -----------
    h_valid = h_tm[:T, :B]                                    # (T, B, H)
    y = jnp.einsum('tbh,ho->bto', h_valid, w_fc) + b_fc       # (B, T, O)
    return y


def init_params(key, input_size, hidden_dim, output_dim):
    """Deterministic init mirroring PyTorch shapes/values.

    PyTorch: weight_ih_l0 (3H, I), weight_hh_l0 (3H, H), gate order (r, z, n).
    Stored here gate-major and transposed: (3, I, H) / (3, H, H) so the kernel
    and wrapper can do x @ W directly.
    """
    k = jax.random.split(key, 6)
    bound = 1.0 / np.sqrt(hidden_dim)
    w_ih = jax.random.uniform(k[0], (3, input_size, hidden_dim), jnp.float32, -bound, bound)
    w_hh = jax.random.uniform(k[1], (3, hidden_dim, hidden_dim), jnp.float32, -bound, bound)
    b_ih = jax.random.uniform(k[2], (3, hidden_dim), jnp.float32, -bound, bound)
    b_hh = jax.random.uniform(k[3], (3, hidden_dim), jnp.float32, -bound, bound)
    # nn.Linear(hidden_dim, output_dim): weight (O, H) -> stored as (H, O)
    w_fc = jax.random.uniform(k[4], (hidden_dim, output_dim), jnp.float32, -bound, bound)
    b_fc = jax.random.uniform(k[5], (output_dim,), jnp.float32, -bound, bound)
    return w_ih, w_hh, b_ih, b_hh, w_fc, b_fc


def rssm_reference(x, params):
    """Pure-JAX reference (PyTorch GRU + Linear semantics) for validation."""
    w_ih, w_hh, b_ih, b_hh, w_fc, b_fc = params
    B, T, I = x.shape
    H = w_hh.shape[-1]

    def step(h, x_t):
        gx = jnp.einsum('bi,gih->gbh', x_t, w_ih) + b_ih[:, None, :]
        gh = jnp.einsum('bh,ghk->gbk', h, w_hh) + b_hh[:, None, :]
        r = jax.nn.sigmoid(gx[0] + gh[0])
        z = jax.nn.sigmoid(gx[1] + gh[1])
        n = jnp.tanh(gx[2] + r * gh[2])
        h_new = (1.0 - z) * n + z * h
        return h_new, h_new

    h0 = jnp.zeros((B, H), jnp.float32)
    _, hs = lax.scan(step, h0, jnp.transpose(x, (1, 0, 2)))   # (T, B, H)
    return jnp.einsum('tbh,ho->bto', hs, w_fc) + b_fc


if __name__ == "__main__":
    B, T = 2, 8
    input_size, hidden_dim, output_dim = 4, 32, 16

    key = jax.random.PRNGKey(0)
    kx, kp = jax.random.split(key)
    x = jax.random.normal(kx, (B, T, input_size), jnp.float32)
    params = init_params(kp, input_size, hidden_dim, output_dim)

    out = jax.block_until_ready(rssm_forward(x, params))
    ref = jax.block_until_ready(rssm_reference(x, params))
    np.testing.assert_allclose(np.asarray(out), np.asarray(ref), rtol=1e-5, atol=1e-5)

    print("KERNEL_OK")
</pallas_src>

<mosaic_0001>
module attributes {stable_mosaic.version = 11 : i64} {
  func.func @_gru_recurrence_kernel(%arg0: i32, %arg1: i32, %arg2: memref<8x3x8x32xf32, #tpu.memory_space<vmem>>, %arg3: memref<3x32x32xf32, #tpu.memory_space<vmem>>, %arg4: memref<3x1x32xf32, #tpu.memory_space<vmem>>, %arg5: memref<8x8x32xf32, #tpu.memory_space<vmem>>, %arg6: memref<8x32xf32, #tpu.memory_space<vmem>>) attributes {dimension_semantics = [#tpu.dimension_semantics<parallel>, #tpu.dimension_semantics<arbitrary>], iteration_bounds = array<i64: 1, 1>, scalar_prefetch = 0 : i64, scratch_operands = 1 : i64, tpu.core_type = #tpu.core_type<tc>, window_params = [{transform_indices = @transform_0, window_bounds = array<i64: 8, 3, 8, 32>}, {pipeline_mode = #tpu.pipeline_mode<synchronous>, transform_indices = @transform_1, window_bounds = array<i64: 3, 32, 32>}, {pipeline_mode = #tpu.pipeline_mode<synchronous>, transform_indices = @transform_2, window_bounds = array<i64: 3, 1, 32>}, {transform_indices = @transform_3, window_bounds = array<i64: 8, 8, 32>}]} {
    %c0_i32 = arith.constant 0 : i32
    %0 = arith.cmpi eq, %arg1, %c0_i32 : i32
    %1 = arith.extui %0 : i1 to i32
    %c0_i32_0 = arith.constant 0 : i32
    %2 = arith.cmpi ne, %1, %c0_i32_0 : i32
    scf.if %2 {
      %cst_108 = arith.constant 0.000000e+00 : f32
      %353 = vector.broadcast %cst_108 : f32 to vector<8x32xf32>
      %c0_109 = arith.constant 0 : index
      %c0_110 = arith.constant 0 : index
      %354 = vector.load %arg6[%c0_109, %c0_110] : memref<8x32xf32, #tpu.memory_space<vmem>>, vector<8x32xf32>
      tpu.vector_store %arg6[%c0_109, %c0_110], %353 {strides = array<i32>} : memref<8x32xf32, #tpu.memory_space<vmem>>, vector<8x32xf32>,
    } else {
    }
    %c0 = arith.constant 0 : index
    %c0_1 = arith.constant 0 : index
    %c0_2 = arith.constant 0 : index
    %3 = vector.load %arg3[%c0, %c0_1, %c0_2] : memref<3x32x32xf32, #tpu.memory_space<vmem>>, vector<1x32x32xf32>
    %4 = vector.shape_cast %3 : vector<1x32x32xf32> to vector<32x32xf32>
    %c1 = arith.constant 1 : index
    %c0_3 = arith.constant 0 : index
    %c0_4 = arith.constant 0 : index
    %5 = vector.load %arg3[%c1, %c0_3, %c0_4] : memref<3x32x32xf32, #tpu.memory_space<vmem>>, vector<1x32x32xf32>
    %6 = vector.shape_cast %5 : vector<1x32x32xf32> to vector<32x32xf32>
    %c2 = arith.constant 2 : index
    %c0_5 = arith.constant 0 : index
    %c0_6 = arith.constant 0 : index
    %7 = vector.load %arg3[%c2, %c0_5, %c0_6] : memref<3x32x32xf32, #tpu.memory_space<vmem>>, vector<1x32x32xf32>
    %8 = vector.shape_cast %7 : vector<1x32x32xf32> to vector<32x32xf32>
    %c0_7 = arith.constant 0 : index
    %c0_8 = arith.constant 0 : index
    %c0_9 = arith.constant 0 : index
    %9 = vector.load %arg4[%c0_7, %c0_8, %c0_9] : memref<3x1x32xf32, #tpu.memory_space<vmem>>, vector<1x1x32xf32>
    %10 = vector.shape_cast %9 : vector<1x1x32xf32> to vector<1x32xf32>
    %c1_10 = arith.constant 1 : index
    %c0_11 = arith.constant 0 : index
    %c0_12 = arith.constant 0 : index
    %11 = vector.load %arg4[%c1_10, %c0_11, %c0_12] : memref<3x1x32xf32, #tpu.memory_space<vmem>>, vector<1x1x32xf32>
    %12 = vector.shape_cast %11 : vector<1x1x32xf32> to vector<1x32xf32>
    %c2_13 = arith.constant 2 : index
    %c0_14 = arith.constant 0 : index
    %c0_15 = arith.constant 0 : index
    %13 = vector.load %arg4[%c2_13, %c0_14, %c0_15] : memref<3x1x32xf32, #tpu.memory_space<vmem>>, vector<1x1x32xf32>
    %14 = vector.shape_cast %13 : vector<1x1x32xf32> to vector<1x32xf32>
    %c0_16 = arith.constant 0 : index
    %c0_17 = arith.constant 0 : index
    %15 = vector.load %arg6[%c0_16, %c0_17] : memref<8x32xf32, #tpu.memory_space<vmem>>, vector<8x32xf32>
    %c0_i32_18 = arith.constant 0 : i32
    %16 = arith.index_cast %c0_i32_18 : i32 to index
    %c0_19 = arith.constant 0 : index
    %c0_20 = arith.constant 0 : index
    %c0_21 = arith.constant 0 : index
    %17 = vector.load %arg2[%16, %c0_19, %c0_20, %c0_21] : memref<8x3x8x32xf32, #tpu.memory_space<vmem>>, vector<1x3x8x32xf32>
    %18 = vector.shape_cast %17 : vector<1x3x8x32xf32> to vector<3x8x32xf32>
    %cst = arith.constant dense<0.000000e+00> : vector<8x32xf32>
    %19 = tpu.matmul %15, %4, %cst {dimension_numbers = #tpu.dot_dimension_numbers<[1], [0], [0], [1], [0, 0, 1, 1], [], []>} : vector<8x32xf32>, vector<32x32xf32>, vector<8x32xf32> -> vector<8x32xf32>
    %20 = vector.broadcast %10 : vector<1x32xf32> to vector<8x32xf32>
    %21 = arith.addf %19, %20 : vector<8x32xf32>
    %cst_22 = arith.constant dense<0.000000e+00> : vector<8x32xf32>
    %22 = tpu.matmul %15, %6, %cst_22 {dimension_numbers = #tpu.dot_dimension_numbers<[1], [0], [0], [1], [0, 0, 1, 1], [], []>} : vector<8x32xf32>, vector<32x32xf32>, vector<8x32xf32> -> vector<8x32xf32>
    %23 = vector.broadcast %12 : vector<1x32xf32> to vector<8x32xf32>
    %24 = arith.addf %22, %23 : vector<8x32xf32>
    %cst_23 = arith.constant dense<0.000000e+00> : vector<8x32xf32>
    %25 = tpu.matmul %15, %8, %cst_23 {dimension_numbers = #tpu.dot_dimension_numbers<[1], [0], [0], [1], [0, 0, 1, 1], [], []>} : vector<8x32xf32>, vector<32x32xf32>, vector<8x32xf32> -> vector<8x32xf32>
    %26 = vector.broadcast %14 : vector<1x32xf32> to vector<8x32xf32>
    %27 = arith.addf %25, %26 : vector<8x32xf32>
    %28 = vector.extract_strided_slice %18 {offsets = [0, 0, 0], sizes = [1, 8, 32], strides = [1, 1, 1]} : vector<3x8x32xf32> to vector<1x8x32xf32>
    %29 = vector.shape_cast %28 : vector<1x8x32xf32> to vector<8x32xf32>
    %30 = arith.addf %29, %21 : vector<8x32xf32>
    %31 = arith.negf %30 : vector<8x32xf32>
    %32 = math.exp %31 : vector<8x32xf32>
    %cst_24 = arith.constant 1.000000e+00 : f32
    %33 = vector.broadcast %cst_24 : f32 to vector<8x32xf32>
    %34 = arith.addf %33, %32 : vector<8x32xf32>
    %35 = arith.divf %33, %34 : vector<8x32xf32>
    %36 = vector.extract_strided_slice %18 {offsets = [1, 0, 0], sizes = [1, 8, 32], strides = [1, 1, 1]} : vector<3x8x32xf32> to vector<1x8x32xf32>
    %37 = vector.shape_cast %36 : vector<1x8x32xf32> to vector<8x32xf32>
    %38 = arith.addf %37, %24 : vector<8x32xf32>
    %39 = arith.negf %38 : vector<8x32xf32>
    %40 = math.exp %39 : vector<8x32xf32>
    %cst_25 = arith.constant 1.000000e+00 : f32
    %41 = vector.broadcast %cst_25 : f32 to vector<8x32xf32>
    %42 = arith.addf %41, %40 : vector<8x32xf32>
    %43 = arith.divf %41, %42 : vector<8x32xf32>
    %44 = vector.extract_strided_slice %18 {offsets = [2, 0, 0], sizes = [1, 8, 32], strides = [1, 1, 1]} : vector<3x8x32xf32> to vector<1x8x32xf32>
    %45 = vector.shape_cast %44 : vector<1x8x32xf32> to vector<8x32xf32>
    %46 = arith.mulf %35, %27 : vector<8x32xf32>
    %47 = arith.addf %45, %46 : vector<8x32xf32>
    %48 = math.tanh %47 : vector<8x32xf32>
    %cst_26 = arith.constant 1.000000e+00 : f32
    %49 = vector.broadcast %cst_26 : f32 to vector<8x32xf32>
    %50 = arith.subf %49, %43 : vector<8x32xf32>
    %51 = arith.mulf %50, %48 : vector<8x32xf32>
    %52 = arith.mulf %43, %15 : vector<8x32xf32>
    %53 = arith.addf %51, %52 : vector<8x32xf32>
    %54 = arith.index_cast %c0_i32_18 : i32 to index
    %c0_27 = arith.constant 0 : index
    %c0_28 = arith.constant 0 : index
    %55 = vector.load %arg5[%54, %c0_27, %c0_28] : memref<8x8x32xf32, #tpu.memory_space<vmem>>, vector<1x8x32xf32>
    %56 = vector.shape_cast %55 : vector<1x8x32xf32> to vector<8x32xf32>
    %57 = vector.shape_cast %53 : vector<8x32xf32> to vector<1x8x32xf32>
    tpu.vector_store %arg5[%54, %c0_27, %c0_28], %57 {strides = array<i32>} : memref<8x8x32xf32, #tpu.memory_space<vmem>>, vector<1x8x32xf32>,
    %c1_i32 = arith.constant 1 : i32
    %58 = arith.index_cast %c1_i32 : i32 to index
    %c0_29 = arith.constant 0 : index
    %c0_30 = arith.constant 0 : index
    %c0_31 = arith.constant 0 : index
    %59 = vector.load %arg2[%58, %c0_29, %c0_30, %c0_31] : memref<8x3x8x32xf32, #tpu.memory_space<vmem>>, vector<1x3x8x32xf32>
    %60 = vector.shape_cast %59 : vector<1x3x8x32xf32> to vector<3x8x32xf32>
    %cst_32 = arith.constant dense<0.000000e+00> : vector<8x32xf32>
    %61 = tpu.matmul %53, %4, %cst_32 {dimension_numbers = #tpu.dot_dimension_numbers<[1], [0], [0], [1], [0, 0, 1, 1], [], []>} : vector<8x32xf32>, vector<32x32xf32>, vector<8x32xf32> -> vector<8x32xf32>
    %62 = vector.broadcast %10 : vector<1x32xf32> to vector<8x32xf32>
    %63 = arith.addf %61, %62 : vector<8x32xf32>
    %cst_33 = arith.constant dense<0.000000e+00> : vector<8x32xf32>
    %64 = tpu.matmul %53, %6, %cst_33 {dimension_numbers = #tpu.dot_dimension_numbers<[1], [0], [0], [1], [0, 0, 1, 1], [], []>} : vector<8x32xf32>, vector<32x32xf32>, vector<8x32xf32> -> vector<8x32xf32>
    %65 = vector.broadcast %12 : vector<1x32xf32> to vector<8x32xf32>
    %66 = arith.addf %64, %65 : vector<8x32xf32>
    %cst_34 = arith.constant dense<0.000000e+00> : vector<8x32xf32>
    %67 = tpu.matmul %53, %8, %cst_34 {dimension_numbers = #tpu.dot_dimension_numbers<[1], [0], [0], [1], [0, 0, 1, 1], [], []>} : vector<8x32xf32>, vector<32x32xf32>, vector<8x32xf32> -> vector<8x32xf32>
    %68 = vector.broadcast %14 : vector<1x32xf32> to vector<8x32xf32>
    %69 = arith.addf %67, %68 : vector<8x32xf32>
    %70 = vector.extract_strided_slice %60 {offsets = [0, 0, 0], sizes = [1, 8, 32], strides = [1, 1, 1]} : vector<3x8x32xf32> to vector<1x8x32xf32>
    %71 = vector.shape_cast %70 : vector<1x8x32xf32> to vector<8x32xf32>
    %72 = arith.addf %71, %63 : vector<8x32xf32>
    %73 = arith.negf %72 : vector<8x32xf32>
    %74 = math.exp %73 : vector<8x32xf32>
    %cst_35 = arith.constant 1.000000e+00 : f32
    %75 = vector.broadcast %cst_35 : f32 to vector<8x32xf32>
    %76 = arith.addf %75, %74 : vector<8x32xf32>
    %77 = arith.divf %75, %76 : vector<8x32xf32>
    %78 = vector.extract_strided_slice %60 {offsets = [1, 0, 0], sizes = [1, 8, 32], strides = [1, 1, 1]} : vector<3x8x32xf32> to vector<1x8x32xf32>
    %79 = vector.shape_cast %78 : vector<1x8x32xf32> to vector<8x32xf32>
    %80 = arith.addf %79, %66 : vector<8x32xf32>
    %81 = arith.negf %80 : vector<8x32xf32>
    %82 = math.exp %81 : vector<8x32xf32>
    %cst_36 = arith.constant 1.000000e+00 : f32
    %83 = vector.broadcast %cst_36 : f32 to vector<8x32xf32>
    %84 = arith.addf %83, %82 : vector<8x32xf32>
    %85 = arith.divf %83, %84 : vector<8x32xf32>
    %86 = vector.extract_strided_slice %60 {offsets = [2, 0, 0], sizes = [1, 8, 32], strides = [1, 1, 1]} : vector<3x8x32xf32> to vector<1x8x32xf32>
    %87 = vector.shape_cast %86 : vector<1x8x32xf32> to vector<8x32xf32>
    %88 = arith.mulf %77, %69 : vector<8x32xf32>
    %89 = arith.addf %87, %88 : vector<8x32xf32>
    %90 = math.tanh %89 : vector<8x32xf32>
    %cst_37 = arith.constant 1.000000e+00 : f32
    %91 = vector.broadcast %cst_37 : f32 to vector<8x32xf32>
    %92 = arith.subf %91, %85 : vector<8x32xf32>
    %93 = arith.mulf %92, %90 : vector<8x32xf32>
    %94 = arith.mulf %85, %53 : vector<8x32xf32>
    %95 = arith.addf %93, %94 : vector<8x32xf32>
    %96 = arith.index_cast %c1_i32 : i32 to index
    %c0_38 = arith.constant 0 : index
    %c0_39 = arith.constant 0 : index
    %97 = vector.load %arg5[%96, %c0_38, %c0_39] : memref<8x8x32xf32, #tpu.memory_space<vmem>>, vector<1x8x32xf32>
    %98 = vector.shape_cast %97 : vector<1x8x32xf32> to vector<8x32xf32>
    %99 = vector.shape_cast %95 : vector<8x32xf32> to vector<1x8x32xf32>
    tpu.vector_store %arg5[%96, %c0_38, %c0_39], %99 {strides = array<i32>} : memref<8x8x32xf32, #tpu.memory_space<vmem>>, vector<1x8x32xf32>,
    %c2_i32 = arith.constant 2 : i32
    %100 = arith.index_cast %c2_i32 : i32 to index
    %c0_40 = arith.constant 0 : index
    %c0_41 = arith.constant 0 : index
    %c0_42 = arith.constant 0 : index
    %101 = vector.load %arg2[%100, %c0_40, %c0_41, %c0_42] : memref<8x3x8x32xf32, #tpu.memory_space<vmem>>, vector<1x3x8x32xf32>
    %102 = vector.shape_cast %101 : vector<1x3x8x32xf32> to vector<3x8x32xf32>
    %cst_43 = arith.constant dense<0.000000e+00> : vector<8x32xf32>
    %103 = tpu.matmul %95, %4, %cst_43 {dimension_numbers = #tpu.dot_dimension_numbers<[1], [0], [0], [1], [0, 0, 1, 1], [], []>} : vector<8x32xf32>, vector<32x32xf32>, vector<8x32xf32> -> vector<8x32xf32>
    %104 = vector.broadcast %10 : vector<1x32xf32> to vector<8x32xf32>
    %105 = arith.addf %103, %104 : vector<8x32xf32>
    %cst_44 = arith.constant dense<0.000000e+00> : vector<8x32xf32>
    %106 = tpu.matmul %95, %6, %cst_44 {dimension_numbers = #tpu.dot_dimension_numbers<[1], [0], [0], [1], [0, 0, 1, 1], [], []>} : vector<8x32xf32>, vector<32x32xf32>, vector<8x32xf32> -> vector<8x32xf32>
    %107 = vector.broadcast %12 : vector<1x32xf32> to vector<8x32xf32>
    %108 = arith.addf %106, %107 : vector<8x32xf32>
    %cst_45 = arith.constant dense<0.000000e+00> : vector<8x32xf32>
    %109 = tpu.matmul %95, %8, %cst_45 {dimension_numbers = #tpu.dot_dimension_numbers<[1], [0], [0], [1], [0, 0, 1, 1], [], []>} : vector<8x32xf32>, vector<32x32xf32>, vector<8x32xf32> -> vector<8x32xf32>
    %110 = vector.broadcast %14 : vector<1x32xf32> to vector<8x32xf32>
    %111 = arith.addf %109, %110 : vector<8x32xf32>
    %112 = vector.extract_strided_slice %102 {offsets = [0, 0, 0], sizes = [1, 8, 32], strides = [1, 1, 1]} : vector<3x8x32xf32> to vector<1x8x32xf32>
    %113 = vector.shape_cast %112 : vector<1x8x32xf32> to vector<8x32xf32>
    %114 = arith.addf %113, %105 : vector<8x32xf32>
    %115 = arith.negf %114 : vector<8x32xf32>
    %116 = math.exp %115 : vector<8x32xf32>
    %cst_46 = arith.constant 1.000000e+00 : f32
    %117 = vector.broadcast %cst_46 : f32 to vector<8x32xf32>
    %118 = arith.addf %117, %116 : vector<8x32xf32>
    %119 = arith.divf %117, %118 : vector<8x32xf32>
    %120 = vector.extract_strided_slice %102 {offsets = [1, 0, 0], sizes = [1, 8, 32], strides = [1, 1, 1]} : vector<3x8x32xf32> to vector<1x8x32xf32>
    %121 = vector.shape_cast %120 : vector<1x8x32xf32> to vector<8x32xf32>
    %122 = arith.addf %121, %108 : vector<8x32xf32>
    %123 = arith.negf %122 : vector<8x32xf32>
    %124 = math.exp %123 : vector<8x32xf32>
    %cst_47 = arith.constant 1.000000e+00 : f32
    %125 = vector.broadcast %cst_47 : f32 to vector<8x32xf32>
    %126 = arith.addf %125, %124 : vector<8x32xf32>
    %127 = arith.divf %125, %126 : vector<8x32xf32>
    %128 = vector.extract_strided_slice %102 {offsets = [2, 0, 0], sizes = [1, 8, 32], strides = [1, 1, 1]} : vector<3x8x32xf32> to vector<1x8x32xf32>
    %129 = vector.shape_cast %128 : vector<1x8x32xf32> to vector<8x32xf32>
    %130 = arith.mulf %119, %111 : vector<8x32xf32>
    %131 = arith.addf %129, %130 : vector<8x32xf32>
    %132 = math.tanh %131 : vector<8x32xf32>
    %cst_48 = arith.constant 1.000000e+00 : f32
    %133 = vector.broadcast %cst_48 : f32 to vector<8x32xf32>
    %134 = arith.subf %133, %127 : vector<8x32xf32>
    %135 = arith.mulf %134, %132 : vector<8x32xf32>
    %136 = arith.mulf %127, %95 : vector<8x32xf32>
    %137 = arith.addf %135, %136 : vector<8x32xf32>
    %138 = arith.index_cast %c2_i32 : i32 to index
    %c0_49 = arith.constant 0 : index
    %c0_50 = arith.constant 0 : index
    %139 = vector.load %arg5[%138, %c0_49, %c0_50] : memref<8x8x32xf32, #tpu.memory_space<vmem>>, vector<1x8x32xf32>
    %140 = vector.shape_cast %139 : vector<1x8x32xf32> to vector<8x32xf32>
    %141 = vector.shape_cast %137 : vector<8x32xf32> to vector<1x8x32xf32>
    tpu.vector_store %arg5[%138, %c0_49, %c0_50], %141 {strides = array<i32>} : memref<8x8x32xf32, #tpu.memory_space<vmem>>, vector<1x8x32xf32>,
    %c3_i32 = arith.constant 3 : i32
    %142 = arith.index_cast %c3_i32 : i32 to index
    %c0_51 = arith.constant 0 : index
    %c0_52 = arith.constant 0 : index
    %c0_53 = arith.constant 0 : index
    %143 = vector.load %arg2[%142, %c0_51, %c0_52, %c0_53] : memref<8x3x8x32xf32, #tpu.memory_space<vmem>>, vector<1x3x8x32xf32>
    %144 = vector.shape_cast %143 : vector<1x3x8x32xf32> to vector<3x8x32xf32>
    %cst_54 = arith.constant dense<0.000000e+00> : vector<8x32xf32>
    %145 = tpu.matmul %137, %4, %cst_54 {dimension_numbers = #tpu.dot_dimension_numbers<[1], [0], [0], [1], [0, 0, 1, 1], [], []>} : vector<8x32xf32>, vector<32x32xf32>, vector<8x32xf32> -> vector<8x32xf32>
    %146 = vector.broadcast %10 : vector<1x32xf32> to vector<8x32xf32>
    %147 = arith.addf %145, %146 : vector<8x32xf32>
    %cst_55 = arith.constant dense<0.000000e+00> : vector<8x32xf32>
    %148 = tpu.matmul %137, %6, %cst_55 {dimension_numbers = #tpu.dot_dimension_numbers<[1], [0], [0], [1], [0, 0, 1, 1], [], []>} : vector<8x32xf32>, vector<32x32xf32>, vector<8x32xf32> -> vector<8x32xf32>
    %149 = vector.broadcast %12 : vector<1x32xf32> to vector<8x32xf32>
    %150 = arith.addf %148, %149 : vector<8x32xf32>
    %cst_56 = arith.constant dense<0.000000e+00> : vector<8x32xf32>
    %151 = tpu.matmul %137, %8, %cst_56 {dimension_numbers = #tpu.dot_dimension_numbers<[1], [0], [0], [1], [0, 0, 1, 1], [], []>} : vector<8x32xf32>, vector<32x32xf32>, vector<8x32xf32> -> vector<8x32xf32>
    %152 = vector.broadcast %14 : vector<1x32xf32> to vector<8x32xf32>
    %153 = arith.addf %151, %152 : vector<8x32xf32>
    %154 = vector.extract_strided_slice %144 {offsets = [0, 0, 0], sizes = [1, 8, 32], strides = [1, 1, 1]} : vector<3x8x32xf32> to vector<1x8x32xf32>
    %155 = vector.shape_cast %154 : vector<1x8x32xf32> to vector<8x32xf32>
    %156 = arith.addf %155, %147 : vector<8x32xf32>
    %157 = arith.negf %156 : vector<8x32xf32>
    %158 = math.exp %157 : vector<8x32xf32>
    %cst_57 = arith.constant 1.000000e+00 : f32
    %159 = vector.broadcast %cst_57 : f32 to vector<8x32xf32>
    %160 = arith.addf %159, %158 : vector<8x32xf32>
    %161 = arith.divf %159, %160 : vector<8x32xf32>
    %162 = vector.extract_strided_slice %144 {offsets = [1, 0, 0], sizes = [1, 8, 32], strides = [1, 1, 1]} : vector<3x8x32xf32> to vector<1x8x32xf32>
    %163 = vector.shape_cast %162 : vector<1x8x32xf32> to vector<8x32xf32>
    %164 = arith.addf %163, %150 : vector<8x32xf32>
    %165 = arith.negf %164 : vector<8x32xf32>
    %166 = math.exp %165 : vector<8x32xf32>
    %cst_58 = arith.constant 1.000000e+00 : f32
    %167 = vector.broadcast %cst_58 : f32 to vector<8x32xf32>
    %168 = arith.addf %167, %166 : vector<8x32xf32>
    %169 = arith.divf %167, %168 : vector<8x32xf32>
    %170 = vector.extract_strided_slice %144 {offsets = [2, 0, 0], sizes = [1, 8, 32], strides = [1, 1, 1]} : vector<3x8x32xf32> to vector<1x8x32xf32>
    %171 = vector.shape_cast %170 : vector<1x8x32xf32> to vector<8x32xf32>
    %172 = arith.mulf %161, %153 : vector<8x32xf32>
    %173 = arith.addf %171, %172 : vector<8x32xf32>
    %174 = math.tanh %173 : vector<8x32xf32>
    %cst_59 = arith.constant 1.000000e+00 : f32
    %175 = vector.broadcast %cst_59 : f32 to vector<8x32xf32>
    %176 = arith.subf %175, %169 : vector<8x32xf32>
    %177 = arith.mulf %176, %174 : vector<8x32xf32>
    %178 = arith.mulf %169, %137 : vector<8x32xf32>
    %179 = arith.addf %177, %178 : vector<8x32xf32>
    %180 = arith.index_cast %c3_i32 : i32 to index
    %c0_60 = arith.constant 0 : index
    %c0_61 = arith.constant 0 : index
    %181 = vector.load %arg5[%180, %c0_60, %c0_61] : memref<8x8x32xf32, #tpu.memory_space<vmem>>, vector<1x8x32xf32>
    %182 = vector.shape_cast %181 : vector<1x8x32xf32> to vector<8x32xf32>
    %183 = vector.shape_cast %179 : vector<8x32xf32> to vector<1x8x32xf32>
    tpu.vector_store %arg5[%180, %c0_60, %c0_61], %183 {strides = array<i32>} : memref<8x8x32xf32, #tpu.memory_space<vmem>>, vector<1x8x32xf32>,
    %c4_i32 = arith.constant 4 : i32
    %184 = arith.index_cast %c4_i32 : i32 to index
    %c0_62 = arith.constant 0 : index
    %c0_63 = arith.constant 0 : index
    %c0_64 = arith.constant 0 : index
    %185 = vector.load %arg2[%184, %c0_62, %c0_63, %c0_64] : memref<8x3x8x32xf32, #tpu.memory_space<vmem>>, vector<1x3x8x32xf32>
    %186 = vector.shape_cast %185 : vector<1x3x8x32xf32> to vector<3x8x32xf32>
    %cst_65 = arith.constant dense<0.000000e+00> : vector<8x32xf32>
    %187 = tpu.matmul %179, %4, %cst_65 {dimension_numbers = #tpu.dot_dimension_numbers<[1], [0], [0], [1], [0, 0, 1, 1], [], []>} : vector<8x32xf32>, vector<32x32xf32>, vector<8x32xf32> -> vector<8x32xf32>
    %188 = vector.broadcast %10 : vector<1x32xf32> to vector<8x32xf32>
    %189 = arith.addf %187, %188 : vector<8x32xf32>
    %cst_66 = arith.constant dense<0.000000e+00> : vector<8x32xf32>
    %190 = tpu.matmul %179, %6, %cst_66 {dimension_numbers = #tpu.dot_dimension_numbers<[1], [0], [0], [1], [0, 0, 1, 1], [], []>} : vector<8x32xf32>, vector<32x32xf32>, vector<8x32xf32> -> vector<8x32xf32>
    %191 = vector.broadcast %12 : vector<1x32xf32> to vector<8x32xf32>
    %192 = arith.addf %190, %191 : vector<8x32xf32>
    %cst_67 = arith.constant dense<0.000000e+00> : vector<8x32xf32>
    %193 = tpu.matmul %179, %8, %cst_67 {dimension_numbers = #tpu.dot_dimension_numbers<[1], [0], [0], [1], [0, 0, 1, 1], [], []>} : vector<8x32xf32>, vector<32x32xf32>, vector<8x32xf32> -> vector<8x32xf32>
    %194 = vector.broadcast %14 : vector<1x32xf32> to vector<8x32xf32>
    %195 = arith.addf %193, %194 : vector<8x32xf32>
    %196 = vector.extract_strided_slice %186 {offsets = [0, 0, 0], sizes = [1, 8, 32], strides = [1, 1, 1]} : vector<3x8x32xf32> to vector<1x8x32xf32>
    %197 = vector.shape_cast %196 : vector<1x8x32xf32> to vector<8x32xf32>
    %198 = arith.addf %197, %189 : vector<8x32xf32>
    %199 = arith.negf %198 : vector<8x32xf32>
    %200 = math.exp %199 : vector<8x32xf32>
    %cst_68 = arith.constant 1.000000e+00 : f32
    %201 = vector.broadcast %cst_68 : f32 to vector<8x32xf32>
    %202 = arith.addf %201, %200 : vector<8x32xf32>
    %203 = arith.divf %201, %202 : vector<8x32xf32>
    %204 = vector.extract_strided_slice %186 {offsets = [1, 0, 0], sizes = [1, 8, 32], strides = [1, 1, 1]} : vector<3x8x32xf32> to vector<1x8x32xf32>
    %205 = vector.shape_cast %204 : vector<1x8x32xf32> to vector<8x32xf32>
    %206 = arith.addf %205, %192 : vector<8x32xf32>
    %207 = arith.negf %206 : vector<8x32xf32>
    %208 = math.exp %207 : vector<8x32xf32>
    %cst_69 = arith.constant 1.000000e+00 : f32
    %209 = vector.broadcast %cst_69 : f32 to vector<8x32xf32>
    %210 = arith.addf %209, %208 : vector<8x32xf32>
    %211 = arith.divf %209, %210 : vector<8x32xf32>
    %212 = vector.extract_strided_slice %186 {offsets = [2, 0, 0], sizes = [1, 8, 32], strides = [1, 1, 1]} : vector<3x8x32xf32> to vector<1x8x32xf32>
    %213 = vector.shape_cast %212 : vector<1x8x32xf32> to vector<8x32xf32>
    %214 = arith.mulf %203, %195 : vector<8x32xf32>
    %215 = arith.addf %213, %214 : vector<8x32xf32>
    %216 = math.tanh %215 : vector<8x32xf32>
    %cst_70 = arith.constant 1.000000e+00 : f32
    %217 = vector.broadcast %cst_70 : f32 to vector<8x32xf32>
    %218 = arith.subf %217, %211 : vector<8x32xf32>
    %219 = arith.mulf %218, %216 : vector<8x32xf32>
    %220 = arith.mulf %211, %179 : vector<8x32xf32>
    %221 = arith.addf %219, %220 : vector<8x32xf32>
    %222 = arith.index_cast %c4_i32 : i32 to index
    %c0_71 = arith.constant 0 : index
    %c0_72 = arith.constant 0 : index
    %223 = vector.load %arg5[%222, %c0_71, %c0_72] : memref<8x8x32xf32, #tpu.memory_space<vmem>>, vector<1x8x32xf32>
    %224 = vector.shape_cast %223 : vector<1x8x32xf32> to vector<8x32xf32>
    %225 = vector.shape_cast %221 : vector<8x32xf32> to vector<1x8x32xf32>
    tpu.vector_store %arg5[%222, %c0_71, %c0_72], %225 {strides = array<i32>} : memref<8x8x32xf32, #tpu.memory_space<vmem>>, vector<1x8x32xf32>,
    %c5_i32 = arith.constant 5 : i32
    %226 = arith.index_cast %c5_i32 : i32 to index
    %c0_73 = arith.constant 0 : index
    %c0_74 = arith.constant 0 : index
    %c0_75 = arith.constant 0 : index
    %227 = vector.load %arg2[%226, %c0_73, %c0_74, %c0_75] : memref<8x3x8x32xf32, #tpu.memory_space<vmem>>, vector<1x3x8x32xf32>
    %228 = vector.shape_cast %227 : vector<1x3x8x32xf32> to vector<3x8x32xf32>
    %cst_76 = arith.constant dense<0.000000e+00> : vector<8x32xf32>
    %229 = tpu.matmul %221, %4, %cst_76 {dimension_numbers = #tpu.dot_dimension_numbers<[1], [0], [0], [1], [0, 0, 1, 1], [], []>} : vector<8x32xf32>, vector<32x32xf32>, vector<8x32xf32> -> vector<8x32xf32>
    %230 = vector.broadcast %10 : vector<1x32xf32> to vector<8x32xf32>
    %231 = arith.addf %229, %230 : vector<8x32xf32>
    %cst_77 = arith.constant dense<0.000000e+00> : vector<8x32xf32>
    %232 = tpu.matmul %221, %6, %cst_77 {dimension_numbers = #tpu.dot_dimension_numbers<[1], [0], [0], [1], [0, 0, 1, 1], [], []>} : vector<8x32xf32>, vector<32x32xf32>, vector<8x32xf32> -> vector<8x32xf32>
    %233 = vector.broadcast %12 : vector<1x32xf32> to vector<8x32xf32>
    %234 = arith.addf %232, %233 : vector<8x32xf32>
    %cst_78 = arith.constant dense<0.000000e+00> : vector<8x32xf32>
    %235 = tpu.matmul %221, %8, %cst_78 {dimension_numbers = #tpu.dot_dimension_numbers<[1], [0], [0], [1], [0, 0, 1, 1], [], []>} : vector<8x32xf32>, vector<32x32xf32>, vector<8x32xf32> -> vector<8x32xf32>
    %236 = vector.broadcast %14 : vector<1x32xf32> to vector<8x32xf32>
    %237 = arith.addf %235, %236 : vector<8x32xf32>
    %238 = vector.extract_strided_slice %228 {offsets = [0, 0, 0], sizes = [1, 8, 32], strides = [1, 1, 1]} : vector<3x8x32xf32> to vector<1x8x32xf32>
    %239 = vector.shape_cast %238 : vector<1x8x32xf32> to vector<8x32xf32>
    %240 = arith.addf %239, %231 : vector<8x32xf32>
    %241 = arith.negf %240 : vector<8x32xf32>
    %242 = math.exp %241 : vector<8x32xf32>
    %cst_79 = arith.constant 1.000000e+00 : f32
    %243 = vector.broadcast %cst_79 : f32 to vector<8x32xf32>
    %244 = arith.addf %243, %242 : vector<8x32xf32>
    %245 = arith.divf %243, %244 : vector<8x32xf32>
    %246 = vector.extract_strided_slice %228 {offsets = [1, 0, 0], sizes = [1, 8, 32], strides = [1, 1, 1]} : vector<3x8x32xf32> to vector<1x8x32xf32>
    %247 = vector.shape_cast %246 : vector<1x8x32xf32> to vector<8x32xf32>
    %248 = arith.addf %247, %234 : vector<8x32xf32>
    %249 = arith.negf %248 : vector<8x32xf32>
    %250 = math.exp %249 : vector<8x32xf32>
    %cst_80 = arith.constant 1.000000e+00 : f32
    %251 = vector.broadcast %cst_80 : f32 to vector<8x32xf32>
    %252 = arith.addf %251, %250 : vector<8x32xf32>
    %253 = arith.divf %251, %252 : vector<8x32xf32>
    %254 = vector.extract_strided_slice %228 {offsets = [2, 0, 0], sizes = [1, 8, 32], strides = [1, 1, 1]} : vector<3x8x32xf32> to vector<1x8x32xf32>
    %255 = vector.shape_cast %254 : vector<1x8x32xf32> to vector<8x32xf32>
    %256 = arith.mulf %245, %237 : vector<8x32xf32>
    %257 = arith.addf %255, %256 : vector<8x32xf32>
    %258 = math.tanh %257 : vector<8x32xf32>
    %cst_81 = arith.constant 1.000000e+00 : f32
    %259 = vector.broadcast %cst_81 : f32 to vector<8x32xf32>
    %260 = arith.subf %259, %253 : vector<8x32xf32>
    %261 = arith.mulf %260, %258 : vector<8x32xf32>
    %262 = arith.mulf %253, %221 : vector<8x32xf32>
    %263 = arith.addf %261, %262 : vector<8x32xf32>
    %264 = arith.index_cast %c5_i32 : i32 to index
    %c0_82 = arith.constant 0 : index
    %c0_83 = arith.constant 0 : index
    %265 = vector.load %arg5[%264, %c0_82, %c0_83] : memref<8x8x32xf32, #tpu.memory_space<vmem>>, vector<1x8x32xf32>
    %266 = vector.shape_cast %265 : vector<1x8x32xf32> to vector<8x32xf32>
    %267 = vector.shape_cast %263 : vector<8x32xf32> to vector<1x8x32xf32>
    tpu.vector_store %arg5[%264, %c0_82, %c0_83], %267 {strides = array<i32>} : memref<8x8x32xf32, #tpu.memory_space<vmem>>, vector<1x8x32xf32>,
    %c6_i32 = arith.constant 6 : i32
    %268 = arith.index_cast %c6_i32 : i32 to index
    %c0_84 = arith.constant 0 : index
    %c0_85 = arith.constant 0 : index
    %c0_86 = arith.constant 0 : index
    %269 = vector.load %arg2[%268, %c0_84, %c0_85, %c0_86] : memref<8x3x8x32xf32, #tpu.memory_space<vmem>>, vector<1x3x8x32xf32>
    %270 = vector.shape_cast %269 : vector<1x3x8x32xf32> to vector<3x8x32xf32>
    %cst_87 = arith.constant dense<0.000000e+00> : vector<8x32xf32>
    %271 = tpu.matmul %263, %4, %cst_87 {dimension_numbers = #tpu.dot_dimension_numbers<[1], [0], [0], [1], [0, 0, 1, 1], [], []>} : vector<8x32xf32>, vector<32x32xf32>, vector<8x32xf32> -> vector<8x32xf32>
    %272 = vector.broadcast %10 : vector<1x32xf32> to vector<8x32xf32>
    %273 = arith.addf %271, %272 : vector<8x32xf32>
    %cst_88 = arith.constant dense<0.000000e+00> : vector<8x32xf32>
    %274 = tpu.matmul %263, %6, %cst_88 {dimension_numbers = #tpu.dot_dimension_numbers<[1], [0], [0], [1], [0, 0, 1, 1], [], []>} : vector<8x32xf32>, vector<32x32xf32>, vector<8x32xf32> -> vector<8x32xf32>
    %275 = vector.broadcast %12 : vector<1x32xf32> to vector<8x32xf32>
    %276 = arith.addf %274, %275 : vector<8x32xf32>
    %cst_89 = arith.constant dense<0.000000e+00> : vector<8x32xf32>
    %277 = tpu.matmul %263, %8, %cst_89 {dimension_numbers = #tpu.dot_dimension_numbers<[1], [0], [0], [1], [0, 0, 1, 1], [], []>} : vector<8x32xf32>, vector<32x32xf32>, vector<8x32xf32> -> vector<8x32xf32>
    %278 = vector.broadcast %14 : vector<1x32xf32> to vector<8x32xf32>
    %279 = arith.addf %277, %278 : vector<8x32xf32>
    %280 = vector.extract_strided_slice %270 {offsets = [0, 0, 0], sizes = [1, 8, 32], strides = [1, 1, 1]} : vector<3x8x32xf32> to vector<1x8x32xf32>
    %281 = vector.shape_cast %280 : vector<1x8x32xf32> to vector<8x32xf32>
    %282 = arith.addf %281, %273 : vector<8x32xf32>
    %283 = arith.negf %282 : vector<8x32xf32>
    %284 = math.exp %283 : vector<8x32xf32>
    %cst_90 = arith.constant 1.000000e+00 : f32
    %285 = vector.broadcast %cst_90 : f32 to vector<8x32xf32>
    %286 = arith.addf %285, %284 : vector<8x32xf32>
    %287 = arith.divf %285, %286 : vector<8x32xf32>
    %288 = vector.extract_strided_slice %270 {offsets = [1, 0, 0], sizes = [1, 8, 32], strides = [1, 1, 1]} : vector<3x8x32xf32> to vector<1x8x32xf32>
    %289 = vector.shape_cast %288 : vector<1x8x32xf32> to vector<8x32xf32>
    %290 = arith.addf %289, %276 : vector<8x32xf32>
    %291 = arith.negf %290 : vector<8x32xf32>
    %292 = math.exp %291 : vector<8x32xf32>
    %cst_91 = arith.constant 1.000000e+00 : f32
    %293 = vector.broadcast %cst_91 : f32 to vector<8x32xf32>
    %294 = arith.addf %293, %292 : vector<8x32xf32>
    %295 = arith.divf %293, %294 : vector<8x32xf32>
    %296 = vector.extract_strided_slice %270 {offsets = [2, 0, 0], sizes = [1, 8, 32], strides = [1, 1, 1]} : vector<3x8x32xf32> to vector<1x8x32xf32>
    %297 = vector.shape_cast %296 : vector<1x8x32xf32> to vector<8x32xf32>
    %298 = arith.mulf %287, %279 : vector<8x32xf32>
    %299 = arith.addf %297, %298 : vector<8x32xf32>
    %300 = math.tanh %299 : vector<8x32xf32>
    %cst_92 = arith.constant 1.000000e+00 : f32
    %301 = vector.broadcast %cst_92 : f32 to vector<8x32xf32>
    %302 = arith.subf %301, %295 : vector<8x32xf32>
    %303 = arith.mulf %302, %300 : vector<8x32xf32>
    %304 = arith.mulf %295, %263 : vector<8x32xf32>
    %305 = arith.addf %303, %304 : vector<8x32xf32>
    %306 = arith.index_cast %c6_i32 : i32 to index
    %c0_93 = arith.constant 0 : index
    %c0_94 = arith.constant 0 : index
    %307 = vector.load %arg5[%306, %c0_93, %c0_94] : memref<8x8x32xf32, #tpu.memory_space<vmem>>, vector<1x8x32xf32>
    %308 = vector.shape_cast %307 : vector<1x8x32xf32> to vector<8x32xf32>
    %309 = vector.shape_cast %305 : vector<8x32xf32> to vector<1x8x32xf32>
    tpu.vector_store %arg5[%306, %c0_93, %c0_94], %309 {strides = array<i32>} : memref<8x8x32xf32, #tpu.memory_space<vmem>>, vector<1x8x32xf32>,
    %c7_i32 = arith.constant 7 : i32
    %310 = arith.index_cast %c7_i32 : i32 to index
    %c0_95 = arith.constant 0 : index
    %c0_96 = arith.constant 0 : index
    %c0_97 = arith.constant 0 : index
    %311 = vector.load %arg2[%310, %c0_95, %c0_96, %c0_97] : memref<8x3x8x32xf32, #tpu.memory_space<vmem>>, vector<1x3x8x32xf32>
    %312 = vector.shape_cast %311 : vector<1x3x8x32xf32> to vector<3x8x32xf32>
    %cst_98 = arith.constant dense<0.000000e+00> : vector<8x32xf32>
    %313 = tpu.matmul %305, %4, %cst_98 {dimension_numbers = #tpu.dot_dimension_numbers<[1], [0], [0], [1], [0, 0, 1, 1], [], []>} : vector<8x32xf32>, vector<32x32xf32>, vector<8x32xf32> -> vector<8x32xf32>
    %314 = vector.broadcast %10 : vector<1x32xf32> to vector<8x32xf32>
    %315 = arith.addf %313, %314 : vector<8x32xf32>
    %cst_99 = arith.constant dense<0.000000e+00> : vector<8x32xf32>
    %316 = tpu.matmul %305, %6, %cst_99 {dimension_numbers = #tpu.dot_dimension_numbers<[1], [0], [0], [1], [0, 0, 1, 1], [], []>} : vector<8x32xf32>, vector<32x32xf32>, vector<8x32xf32> -> vector<8x32xf32>
    %317 = vector.broadcast %12 : vector<1x32xf32> to vector<8x32xf32>
    %318 = arith.addf %316, %317 : vector<8x32xf32>
    %cst_100 = arith.constant dense<0.000000e+00> : vector<8x32xf32>
    %319 = tpu.matmul %305, %8, %cst_100 {dimension_numbers = #tpu.dot_dimension_numbers<[1], [0], [0], [1], [0, 0, 1, 1], [], []>} : vector<8x32xf32>, vector<32x32xf32>, vector<8x32xf32> -> vector<8x32xf32>
    %320 = vector.broadcast %14 : vector<1x32xf32> to vector<8x32xf32>
    %321 = arith.addf %319, %320 : vector<8x32xf32>
    %322 = vector.extract_strided_slice %312 {offsets = [0, 0, 0], sizes = [1, 8, 32], strides = [1, 1, 1]} : vector<3x8x32xf32> to vector<1x8x32xf32>
    %323 = vector.shape_cast %322 : vector<1x8x32xf32> to vector<8x32xf32>
    %324 = arith.addf %323, %315 : vector<8x32xf32>
    %325 = arith.negf %324 : vector<8x32xf32>
    %326 = math.exp %325 : vector<8x32xf32>
    %cst_101 = arith.constant 1.000000e+00 : f32
    %327 = vector.broadcast %cst_101 : f32 to vector<8x32xf32>
    %328 = arith.addf %327, %326 : vector<8x32xf32>
    %329 = arith.divf %327, %328 : vector<8x32xf32>
    %330 = vector.extract_strided_slice %312 {offsets = [1, 0, 0], sizes = [1, 8, 32], strides = [1, 1, 1]} : vector<3x8x32xf32> to vector<1x8x32xf32>
    %331 = vector.shape_cast %330 : vector<1x8x32xf32> to vector<8x32xf32>
    %332 = arith.addf %331, %318 : vector<8x32xf32>
    %333 = arith.negf %332 : vector<8x32xf32>
    %334 = math.exp %333 : vector<8x32xf32>
    %cst_102 = arith.constant 1.000000e+00 : f32
    %335 = vector.broadcast %cst_102 : f32 to vector<8x32xf32>
    %336 = arith.addf %335, %334 : vector<8x32xf32>
    %337 = arith.divf %335, %336 : vector<8x32xf32>
    %338 = vector.extract_strided_slice %312 {offsets = [2, 0, 0], sizes = [1, 8, 32], strides = [1, 1, 1]} : vector<3x8x32xf32> to vector<1x8x32xf32>
    %339 = vector.shape_cast %338 : vector<1x8x32xf32> to vector<8x32xf32>
    %340 = arith.mulf %329, %321 : vector<8x32xf32>
    %341 = arith.addf %339, %340 : vector<8x32xf32>
    %342 = math.tanh %341 : vector<8x32xf32>
    %cst_103 = arith.constant 1.000000e+00 : f32
    %343 = vector.broadcast %cst_103 : f32 to vector<8x32xf32>
    %344 = arith.subf %343, %337 : vector<8x32xf32>
    %345 = arith.mulf %344, %342 : vector<8x32xf32>
    %346 = arith.mulf %337, %305 : vector<8x32xf32>
    %347 = arith.addf %345, %346 : vector<8x32xf32>
    %348 = arith.index_cast %c7_i32 : i32 to index
    %c0_104 = arith.constant 0 : index
    %c0_105 = arith.constant 0 : index
    %349 = vector.load %arg5[%348, %c0_104, %c0_105] : memref<8x8x32xf32, #tpu.memory_space<vmem>>, vector<1x8x32xf32>
    %350 = vector.shape_cast %349 : vector<1x8x32xf32> to vector<8x32xf32>
    %351 = vector.shape_cast %347 : vector<8x32xf32> to vector<1x8x32xf32>
    tpu.vector_store %arg5[%348, %c0_104, %c0_105], %351 {strides = array<i32>} : memref<8x8x32xf32, #tpu.memory_space<vmem>>, vector<1x8x32xf32>,
    %c8_i32 = arith.constant 8 : i32
    %c0_106 = arith.constant 0 : index
    %c0_107 = arith.constant 0 : index
    %352 = vector.load %arg6[%c0_106, %c0_107] : memref<8x32xf32, #tpu.memory_space<vmem>>, vector<8x32xf32>
    tpu.vector_store %arg6[%c0_106, %c0_107], %347 {strides = array<i32>} : memref<8x32xf32, #tpu.memory_space<vmem>>, vector<8x32xf32>,
    return
  }
  func.func @transform_0(%arg0: i32, %arg1: i32) -> (i32, i32, i32, i32) {
    %c0_i32 = arith.constant 0 : i32
    %c0_i32_0 = arith.constant 0 : i32
    %c0_i32_1 = arith.constant 0 : i32
    return %arg1, %c0_i32, %arg0, %c0_i32_0 : i32, i32, i32, i32
  }
  func.func @transform_1(%arg0: i32, %arg1: i32) -> (i32, i32, i32) {
    %c0_i32 = arith.constant 0 : i32
    %c0_i32_0 = arith.constant 0 : i32
    %c0_i32_1 = arith.constant 0 : i32
    %c0_i32_2 = arith.constant 0 : i32
    return %c0_i32, %c0_i32_0, %c0_i32_1 : i32, i32, i32
  }
  func.func @transform_2(%arg0: i32, %arg1: i32) -> (i32, i32, i32) {
    %c0_i32 = arith.constant 0 : i32
    %c0_i32_0 = arith.constant 0 : i32
    %c0_i32_1 = arith.constant 0 : i32
    %c0_i32_2 = arith.constant 0 : i32
    return %c0_i32, %c0_i32_0, %c0_i32_1 : i32, i32, i32
  }
  func.func @transform_3(%arg0: i32, %arg1: i32) -> (i32, i32, i32) {
    %c0_i32 = arith.constant 0 : i32
    %c0_i32_0 = arith.constant 0 : i32
    return %arg1, %arg0, %c0_i32 : i32, i32, i32
  }
}

</mosaic_0001>

<llo_original>
// kernel: tpu_custom_call.1
$region0: #{tpu_custom_call.1}
  #allocation0 [shape = 'u32[]', space=smem, size = 0x4, offset = 0x4, fixed_abs, tag = 'smem constant byte address 0x4 - core index']
  #allocation1 [shape = 'u32[144,128]{1,0:T(1,128)}', space=vmem, size = 0x12000, scoped, tag = 'internal scratch']
  #allocation2 [shape = 'f32[8,32]{1,0:T(8,128)}', space=vmem, size = 0x1000, scoped, tag = 'scratch operand']
  %s0 = inlined_call_operand.hbm [shape: f32[8,3,8,32], index: 0, kind: input, shape index: {}]
  %s1 = inlined_call_operand.hbm [shape: f32[3,32,32], index: 1, kind: input, shape index: {}]
  %s2 = inlined_call_operand.vmem [shape: f32[3,1,32], index: 2, kind: input, shape index: {}]
  %s3 = inlined_call_operand.hbm [shape: f32[8,8,32], index: 3, kind: output, shape index: {}]
  %s4 = sld [smem:[#allocation0]]
  $region34: #{tpu_custom_call.1} parent=0
    _
  %s6 = ssub.s32 1, %s4
  %s7 = scalar_select 0, %s6, %s4
  $region1: #{tpu_custom_call.1} parent=0
    #allocation3 [shape = 'u8[98304]{0}', space=vmem, size = 0x18000, scoped, tag = 'input window, operand 0, single buffered']
    #allocation4 [shape = 's32[1]{0}', space=sflag, size = 0x4, scoped, tag = 'scoped memory for tpu_custom_call.1']
    #allocation5 [shape = 's32[1]{0}', space=sflag, size = 0x4, scoped, tag = 'scoped memory for tpu_custom_call.1']
    #allocation6 [shape = 'u8[49152]{0}', space=vmem, size = 0xc000, scoped, tag = 'input window, operand 1, single buffered']
    #allocation7 [shape = 's32[1]{0}', space=sflag, size = 0x4, scoped, tag = 'scoped memory for tpu_custom_call.1']
    #allocation8 [shape = 'u8[32768]{0}', space=vmem, size = 0x8000, scoped, tag = 'output window, operand 0, single buffered']
    %8 = vsyncpa [#allocation4], 0
    %9 = vsyncpa [#allocation7], 0
    %10 = vsyncpa [#allocation5], 0
    // Predicated region
    $region2: #{tpu_custom_call.1} parent=1 // pred_check
      _
    $region3: #{tpu_custom_call.1} parent=1 // pred_check_branch
      %12 = sbr.rel (0) target = $region5
    $region4: #{tpu_custom_call.1} parent=1 // pred_region
      %s14 = ssub.s32 3072, 3072
      %15 = vsyncadd [#allocation4], %s14
      %s16 = sshll.u32 [#allocation3], 4
      %s17 = int_to_ptr.vmem [resolvable:$true] %s16
      %22 = dma.hbm_to_vmem [thread:$0]  %s0, 3072, %s17, [#allocation4], 128, 128, 8
    $region5: #{tpu_custom_call.1} parent=1 // pred_fallthru
      _
    // Predicated region
    $region6: #{tpu_custom_call.1} parent=1 // pred_check
      _
    $region7: #{tpu_custom_call.1} parent=1 // pred_check_branch
      %24 = sbr.rel (0) target = $region9
    $region8: #{tpu_custom_call.1} parent=1 // pred_region
      %s26 = ssub.s32 1536, 1536
      %27 = vsyncadd [#allocation7], %s26
      %s28 = sshll.u32 [#allocation6], 4
      %s29 = int_to_ptr.vmem [resolvable:$true] %s28
      %34 = dma.hbm_to_vmem [thread:$0]  %s1, 1536, %s29, [#allocation7], 128, 128, 8
    $region9: #{tpu_custom_call.1} parent=1 // pred_fallthru
      _
    // Predicated region
    $region10: #{tpu_custom_call.1} parent=1 // pred_check
      _
    $region11: #{tpu_custom_call.1} parent=1 // pred_check_branch
      %36 = sbr.rel (0) target = $region13
    $region12: #{tpu_custom_call.1} parent=1 // pred_region
      _
    $region13: #{tpu_custom_call.1} parent=1 // pred_fallthru
      _
    // Predicated region
    $region14: #{tpu_custom_call.1} parent=1 // pred_check
      _
    $region15: #{tpu_custom_call.1} parent=1 // pred_check_branch
      %38 = sbr.rel (0) target = $region17
    $region16: #{tpu_custom_call.1} parent=1 // pred_region
      %39 = dma.done [#allocation4], 3072
    $region17: #{tpu_custom_call.1} parent=1 // pred_fallthru
      _
    // Predicated region
    $region18: #{tpu_custom_call.1} parent=1 // pred_check
      _
    $region19: #{tpu_custom_call.1} parent=1 // pred_check_branch
      %41 = sbr.rel (0) target = $region21
    $region20: #{tpu_custom_call.1} parent=1 // pred_region
      %42 = dma.done [#allocation7], 1536
    $region21: #{tpu_custom_call.1} parent=1 // pred_fallthru
      _
    %p43 = scmp.eq.s32.totalorder 0, 0
    // Predicated region
    $region22: #{tpu_custom_call.1} parent=1 // pred_check
      %p44 = pneg %p43
    $region23: #{tpu_custom_call.1} parent=1 // pred_check_branch
      %46 = sbr.rel (%p44) target = $region25
    $region24: #{tpu_custom_call.1} parent=1 // pred_region
      %vm47 = vcmask 261120
      %48 = vst.msk [vmem:[#allocation2] sm:$0xff] %vm47, 0.0
    $region25: #{tpu_custom_call.1} parent=1 // pred_fallthru
      _
    %v49 = vld [vmem:[#allocation6] sm:$0xff]
    %v50 = vld [vmem:[#allocation6 + $0x8] sm:$0xff]
    %v51 = vld [vmem:[#allocation6 + $0x10] sm:$0xff]
    %v52 = vld [vmem:[#allocation6 + $0x18] sm:$0xff]
    %s53 = scalar_lea.vmem [#allocation6], 32
    %v54 = vld [vmem:[%s53] sm:$0xff]
    %v55 = vld [vmem:[%s53 + $0x8] sm:$0xff]
    %v56 = vld [vmem:[%s53 + $0x10] sm:$0xff]
    %v57 = vld [vmem:[%s53 + $0x18] sm:$0xff]
    %s58 = scalar_lea.vmem [#allocation6], 64
    %v59 = vld [vmem:[%s58] sm:$0xff]
    %v60 = vld [vmem:[%s58 + $0x8] sm:$0xff]
    %v61 = vld [vmem:[%s58 + $0x10] sm:$0xff]
    %v62 = vld [vmem:[%s58 + $0x18] sm:$0xff]
    %v63 = vld [vmem:[%s2] sm:$0x1]
    %s64 = scalar_lea.vmem %s2, 1
    %v65 = vld [vmem:[%s64] sm:$0x1]
    %s66 = scalar_lea.vmem %s2, 2
    %v67 = vld [vmem:[%s66] sm:$0x1]
    %v68 = vld [vmem:[#allocation2] sm:$0xff]
    %v69 = vld [vmem:[#allocation3] sm:$0xff]
    %v70 = vld [vmem:[#allocation3 + $0x8] sm:$0xff]
    %v71 = vld [vmem:[#allocation3 + $0x10] sm:$0xff]
    %v73 = vlaneseq
    %v74 = vshrl.u32 %v73, 7
    %v75 = vsub.s32 0, %v74
    %v76 = vrot.slane %v63, %v75
    %vm78 = vcmask 261120
    %v80 = vsel %vm78, %v68, 0
    %82 = vmatprep.subr.mxu0 0.0
    %83 = vmatpush1.msra.mxu0 %v49
    %84 = vmatprep.subr.mxu0 0.0
    %85 = vmatpush1.msra.mxu0 %v50
    %86 = vmatprep.subr.mxu0 0.0
    %87 = vmatpush1.msra.mxu0 %v51
    %88 = vmatprep.subr.mxu0 0.0
    %89 = vmatpush1.msra.mxu0 %v52
    %90 = vmatprep.subr.mxu0 0.0
    %91 = vmatpush1.msra.mxu0 0.0
    %92 = vmatprep.subr.mxu0 0.0
    %93 = vmatpush1.msra.mxu0 0.0
    %94 = vmatprep.subr.mxu0 0.0
    %95 = vmatpush1.msra.mxu0 0.0
    %96 = vmatprep.subr.mxu0 0.0
    %97 = vmatpush1.msra.mxu0 0.0
    %98 = vmatprep.subr.mxu0 0.0
    %99 = vmatpush1.msra.mxu0 0.0
    %100 = vmatprep.subr.mxu0 0.0
    %101 = vmatpush1.msra.mxu0 0.0
    %102 = vmatprep.subr.mxu0 0.0
    %103 = vmatpush1.msra.mxu0 0.0
    %104 = vmatprep.subr.mxu0 0.0
    %105 = vmatpush1.msra.mxu0 0.0
    %106 = vmatprep.subr.mxu0 0.0
    %107 = vmatpush1.msra.mxu0 0.0
    %108 = vmatprep.subr.mxu0 0.0
    %109 = vmatpush1.msra.mxu0 0.0
    %110 = vmatprep.subr.mxu0 0.0
    %111 = vmatpush1.msra.mxu0 0.0
    %112 = vmatprep.subr.mxu0 0.0
    %113 = vmatpush1.msra.mxu0 0.0
    %114 = vmatprep.subr.mxu0 0.0
    %115 = vmatpush1.msra.mxu0 0.0
    %116 = vmatprep.subr.mxu0 0.0
    %117 = vmatpush1.msra.mxu0 0.0
    %118 = vmatprep.subr.mxu0 0.0
    %119 = vmatpush1.msra.mxu0 0.0
    %120 = vmatprep.subr.mxu0 0.0
    %121 = vmatpush1.msra.mxu0 0.0
    %122 = vmatprep.subr.mxu0 0.0
    %123 = vmatpush1.msra.mxu0 0.0
    %124 = vmatprep.subr.mxu0 0.0
    %125 = vmatpush1.msra.mxu0 0.0
    %126 = vmatprep.subr.mxu0 0.0
    %127 = vmatpush1.msra.mxu0 0.0
    %128 = vmatprep.subr.mxu0 0.0
    %129 = vmatpush1.msra.mxu0 0.0
    %130 = vmatprep.subr.mxu0 0.0
    %131 = vmatpush1.msra.mxu0 0.0
    %132 = vmatprep.subr.mxu0 0.0
    %133 = vmatpush1.msra.mxu0 0.0
    %134 = vmatprep.subr.mxu0 0.0
    %135 = vmatpush1.msra.mxu0 0.0
    %136 = vmatprep.subr.mxu0 0.0
    %137 = vmatpush1.msra.mxu0 0.0
    %138 = vmatprep.subr.mxu0 0.0
    %139 = vmatpush1.msra.mxu0 0.0
    %140 = vmatprep.subr.mxu0 0.0
    %141 = vmatpush1.msra.mxu0 0.0
    %142 = vmatprep.subr.mxu0 0.0
    %143 = vmatpush1.msra.mxu0 0.0
    %144 = vmatprep.subr.mxu0 0.0
    %145 = vmatpush1.msra.mxu0 0.0
    %146 = vmatprep.mubr.f32.mxu0 0.0
    %147 = vmatmul.mubr.f32.gmra.mrb[0].mxu0 %v80
    %v148 = vpop.f32.mrb[0].mxu0
    %v149 = vadd.f32 %v76, %v148
    %v150 = vpop.f32.mrb[0].mxu0
    %151 = vdwg.mxu0
    %v153 = vlaneseq
    %v154 = vshrl.u32 %v153, 7
    %v155 = vsub.s32 0, %v154
    %v156 = vrot.slane %v65, %v155
    %158 = vmatprep.subr.mxu0 0.0
    %159 = vmatpush1.msra.mxu0 %v54
    %160 = vmatprep.subr.mxu0 0.0
    %161 = vmatpush1.msra.mxu0 %v55
    %162 = vmatprep.subr.mxu0 0.0
    %163 = vmatpush1.msra.mxu0 %v56
    %164 = vmatprep.subr.mxu0 0.0
    %165 = vmatpush1.msra.mxu0 %v57
    %166 = vmatprep.subr.mxu0 0.0
    %167 = vmatpush1.msra.mxu0 0.0
    %168 = vmatprep.subr.mxu0 0.0
    %169 = vmatpush1.msra.mxu0 0.0
    %170 = vmatprep.subr.mxu0 0.0
    %171 = vmatpush1.msra.mxu0 0.0
    %172 = vmatprep.subr.mxu0 0.0
    %173 = vmatpush1.msra.mxu0 0.0
    %174 = vmatprep.subr.mxu0 0.0
    %175 = vmatpush1.msra.mxu0 0.0
    %176 = vmatprep.subr.mxu0 0.0
    %177 = vmatpush1.msra.mxu0 0.0
    %178 = vmatprep.subr.mxu0 0.0
    %179 = vmatpush1.msra.mxu0 0.0
    %180 = vmatprep.subr.mxu0 0.0
    %181 = vmatpush1.msra.mxu0 0.0
    %182 = vmatprep.subr.mxu0 0.0
    %183 = vmatpush1.msra.mxu0 0.0
    %184 = vmatprep.subr.mxu0 0.0
    %185 = vmatpush1.msra.mxu0 0.0
    %186 = vmatprep.subr.mxu0 0.0
    %187 = vmatpush1.msra.mxu0 0.0
    %188 = vmatprep.subr.mxu0 0.0
    %189 = vmatpush1.msra.mxu0 0.0
    %190 = vmatprep.subr.mxu0 0.0
    %191 = vmatpush1.msra.mxu0 0.0
    %192 = vmatprep.subr.mxu0 0.0
    %193 = vmatpush1.msra.mxu0 0.0
    %194 = vmatprep.subr.mxu0 0.0
    %195 = vmatpush1.msra.mxu0 0.0
    %196 = vmatprep.subr.mxu0 0.0
    %197 = vmatpush1.msra.mxu0 0.0
    %198 = vmatprep.subr.mxu0 0.0
    %199 = vmatpush1.msra.mxu0 0.0
    %200 = vmatprep.subr.mxu0 0.0
    %201 = vmatpush1.msra.mxu0 0.0
    %202 = vmatprep.subr.mxu0 0.0
    %203 = vmatpush1.msra.mxu0 0.0
    %204 = vmatprep.subr.mxu0 0.0
    %205 = vmatpush1.msra.mxu0 0.0
    %206 = vmatprep.subr.mxu0 0.0
    %207 = vmatpush1.msra.mxu0 0.0
    %208 = vmatprep.subr.mxu0 0.0
    %209 = vmatpush1.msra.mxu0 0.0
    %210 = vmatprep.subr.mxu0 0.0
    %211 = vmatpush1.msra.mxu0 0.0
    %212 = vmatprep.subr.mxu0 0.0
    %213 = vmatpush1.msra.mxu0 0.0
    %214 = vmatprep.subr.mxu0 0.0
    %215 = vmatpush1.msra.mxu0 0.0
    %216 = vmatprep.subr.mxu0 0.0
    %217 = vmatpush1.msra.mxu0 0.0
    %218 = vmatprep.subr.mxu0 0.0
    %219 = vmatpush1.msra.mxu0 0.0
    %220 = vmatprep.subr.mxu0 0.0
    %221 = vmatpush1.msra.mxu0 0.0
    %222 = vmatprep.mubr.f32.mxu0 0.0
    %223 = vmatmul.mubr.f32.gmra.mrb[0].mxu0 %v80
    %v224 = vpop.f32.mrb[0].mxu0
    %v225 = vadd.f32 %v156, %v224
    %v226 = vpop.f32.mrb[0].mxu0
    %227 = vdwg.mxu0
    %v229 = vlaneseq
    %v230 = vshrl.u32 %v229, 7
    %v231 = vsub.s32 0, %v230
    %v232 = vrot.slane %v67, %v231
    %234 = vmatprep.subr.mxu0 0.0
    %235 = vmatpush1.msra.mxu0 %v59
    %236 = vmatprep.subr.mxu0 0.0
    %237 = vmatpush1.msra.mxu0 %v60
    %238 = vmatprep.subr.mxu0 0.0
    %239 = vmatpush1.msra.mxu0 %v61
    %240 = vmatprep.subr.mxu0 0.0
    %241 = vmatpush1.msra.mxu0 %v62
    %242 = vmatprep.subr.mxu0 0.0
    %243 = vmatpush1.msra.mxu0 0.0
    %244 = vmatprep.subr.mxu0 0.0
    %245 = vmatpush1.msra.mxu0 0.0
    %246 = vmatprep.subr.mxu0 0.0
    %247 = vmatpush1.msra.mxu0 0.0
    %248 = vmatprep.subr.mxu0 0.0
    %249 = vmatpush1.msra.mxu0 0.0
    %250 = vmatprep.subr.mxu0 0.0
    %251 = vmatpush1.msra.mxu0 0.0
    %252 = vmatprep.subr.mxu0 0.0
    %253 = vmatpush1.msra.mxu0 0.0
    %254 = vmatprep.subr.mxu0 0.0
    %255 = vmatpush1.msra.mxu0 0.0
    %256 = vmatprep.subr.mxu0 0.0
    %257 = vmatpush1.msra.mxu0 0.0
    %258 = vmatprep.subr.mxu0 0.0
    %259 = vmatpush1.msra.mxu0 0.0
    %260 = vmatprep.subr.mxu0 0.0
    %261 = vmatpush1.msra.mxu0 0.0
    %262 = vmatprep.subr.mxu0 0.0
    %263 = vmatpush1.msra.mxu0 0.0
    %264 = vmatprep.subr.mxu0 0.0
    %265 = vmatpush1.msra.mxu0 0.0
    %266 = vmatprep.subr.mxu0 0.0
    %267 = vmatpush1.msra.mxu0 0.0
    %268 = vmatprep.subr.mxu0 0.0
    %269 = vmatpush1.msra.mxu0 0.0
    %270 = vmatprep.subr.mxu0 0.0
    %271 = vmatpush1.msra.mxu0 0.0
    %272 = vmatprep.subr.mxu0 0.0
    %273 = vmatpush1.msra.mxu0 0.0
    %274 = vmatprep.subr.mxu0 0.0
    %275 = vmatpush1.msra.mxu0 0.0
    %276 = vmatprep.subr.mxu0 0.0
    %277 = vmatpush1.msra.mxu0 0.0
    %278 = vmatprep.subr.mxu0 0.0
    %279 = vmatpush1.msra.mxu0 0.0
    %280 = vmatprep.subr.mxu0 0.0
    %281 = vmatpush1.msra.mxu0 0.0
    %282 = vmatprep.subr.mxu0 0.0
    %283 = vmatpush1.msra.mxu0 0.0
    %284 = vmatprep.subr.mxu0 0.0
    %285 = vmatpush1.msra.mxu0 0.0
    %286 = vmatprep.subr.mxu0 0.0
    %287 = vmatpush1.msra.mxu0 0.0
    %288 = vmatprep.subr.mxu0 0.0
    %289 = vmatpush1.msra.mxu0 0.0
    %290 = vmatprep.subr.mxu0 0.0
    %291 = vmatpush1.msra.mxu0 0.0
    %292 = vmatprep.subr.mxu0 0.0
    %293 = vmatpush1.msra.mxu0 0.0
    %294 = vmatprep.subr.mxu0 0.0
    %295 = vmatpush1.msra.mxu0 0.0
    %296 = vmatprep.subr.mxu0 0.0
    %297 = vmatpush1.msra.mxu0 0.0
    %298 = vmatprep.mubr.f32.mxu0 0.0
    %299 = vmatmul.mubr.f32.gmra.mrb[0].mxu0 %v80
    %v300 = vpop.f32.mrb[0].mxu0
    %v301 = vadd.f32 %v232, %v300
    %v302 = vpop.f32.mrb[0].mxu0
    %303 = vdwg.mxu0
    %v304 = vadd.f32 %v69, %v149
    %v305 = vxor.u32 %v304, 2147483648
    %v306 = vmul.f32 %v305, 1.442695
    %v307 = vpow.pop %v306
    %v308 = vadd.f32 %v307, 1.0
    %v309 = vrcp.pop %v308
    %v310 = vmul.f32 1.0, %v309
    %v311 = vadd.f32 %v70, %v225
    %v312 = vxor.u32 %v311, 2147483648
    %v313 = vmul.f32 %v312, 1.442695
    %v314 = vpow.pop %v313
    %v315 = vadd.f32 %v314, 1.0
    %v316 = vrcp.pop %v315
    %v317 = vmul.f32 1.0, %v316
    %v318 = vmul.f32 %v310, %v301
    %v319 = vadd.f32 %v71, %v318
    %v320 = vtanh.pop %v319
    %v321 = vsub.f32 1.0, %v317
    %v322 = vmul.f32 %v321, %v320
    %v323 = vmul.f32 %v317, %v68
    %v324 = vadd.f32 %v322, %v323
    %325 = vst.msk [vmem:[#allocation8] sm:$0xff] %vm78, %v324
    %s326 = scalar_lea.vmem [#allocation3], 24
    %v327 = vld [vmem:[%s326] sm:$0xff]
    %v328 = vld [vmem:[%s326 + $0x8] sm:$0xff]
    %v329 = vld [vmem:[%s326 + $0x10] sm:$0xff]
    %v331 = vsel %vm78, %v324, 0
    %333 = vmatprep.subr.mxu0 0.0
    %334 = vmatpush1.msra.mxu0 %v49
    %335 = vmatprep.subr.mxu0 0.0
    %336 = vmatpush1.msra.mxu0 %v50
    %337 = vmatprep.subr.mxu0 0.0
    %338 = vmatpush1.msra.mxu0 %v51
    %339 = vmatprep.subr.mxu0 0.0
    %340 = vmatpush1.msra.mxu0 %v52
    %341 = vmatprep.subr.mxu0 0.0
    %342 = vmatpush1.msra.mxu0 0.0
    %343 = vmatprep.subr.mxu0 0.0
    %344 = vmatpush1.msra.mxu0 0.0
    %345 = vmatprep.subr.mxu0 0.0
    %346 = vmatpush1.msra.mxu0 0.0
    %347 = vmatprep.subr.mxu0 0.0
    %348 = vmatpush1.msra.mxu0 0.0
    %349 = vmatprep.subr.mxu0 0.0
    %350 = vmatpush1.msra.mxu0 0.0
    %351 = vmatprep.subr.mxu0 0.0
    %352 = vmatpush1.msra.mxu0 0.0
    %353 = vmatprep.subr.mxu0 0.0
    %354 = vmatpush1.msra.mxu0 0.0
    %355 = vmatprep.subr.mxu0 0.0
    %356 = vmatpush1.msra.mxu0 0.0
    %357 = vmatprep.subr.mxu0 0.0
    %358 = vmatpush1.msra.mxu0 0.0
    %359 = vmatprep.subr.mxu0 0.0
    %360 = vmatpush1.msra.mxu0 0.0
    %361 = vmatprep.subr.mxu0 0.0
    %362 = vmatpush1.msra.mxu0 0.0
    %363 = vmatprep.subr.mxu0 0.0
    %364 = vmatpush1.msra.mxu0 0.0
    %365 = vmatprep.subr.mxu0 0.0
    %366 = vmatpush1.msra.mxu0 0.0
    %367 = vmatprep.subr.mxu0 0.0
    %368 = vmatpush1.msra.mxu0 0.0
    %369 = vmatprep.subr.mxu0 0.0
    %370 = vmatpush1.msra.mxu0 0.0
    %371 = vmatprep.subr.mxu0 0.0
    %372 = vmatpush1.msra.mxu0 0.0
    %373 = vmatprep.subr.mxu0 0.0
    %374 = vmatpush1.msra.mxu0 0.0
    %375 = vmatprep.subr.mxu0 0.0
    %376 = vmatpush1.msra.mxu0 0.0
    %377 = vmatprep.subr.mxu0 0.0
    %378 = vmatpush1.msra.mxu0 0.0
    %379 = vmatprep.subr.mxu0 0.0
    %380 = vmatpush1.msra.mxu0 0.0
    %381 = vmatprep.subr.mxu0 0.0
    %382 = vmatpush1.msra.mxu0 0.0
    %383 = vmatprep.subr.mxu0 0.0
    %384 = vmatpush1.msra.mxu0 0.0
    %385 = vmatprep.subr.mxu0 0.0
    %386 = vmatpush1.msra.mxu0 0.0
    %387 = vmatprep.subr.mxu0 0.0
    %388 = vmatpush1.msra.mxu0 0.0
    %389 = vmatprep.subr.mxu0 0.0
    %390 = vmatpush1.msra.mxu0 0.0
    %391 = vmatprep.subr.mxu0 0.0
    %392 = vmatpush1.msra.mxu0 0.0
    %393 = vmatprep.subr.mxu0 0.0
    %394 = vmatpush1.msra.mxu0 0.0
    %395 = vmatprep.subr.mxu0 0.0
    %396 = vmatpush1.msra.mxu0 0.0
    %397 = vmatprep.mubr.f32.mxu0 0.0
    %398 = vmatmul.mubr.f32.gmra.mrb[0].mxu0 %v331
    %v399 = vpop.f32.mrb[0].mxu0
    %v400 = vadd.f32 %v76, %v399
    %v401 = vpop.f32.mrb[0].mxu0
    %402 = vdwg.mxu0
    %403 = vmatprep.subr.mxu0 0.0
    %404 = vmatpush1.msra.mxu0 %v54
    %405 = vmatprep.subr.mxu0 0.0
    %406 = vmatpush1.msra.mxu0 %v55
    %407 = vmatprep.subr.mxu0 0.0
    %408 = vmatpush1.msra.mxu0 %v56
    %409 = vmatprep.subr.mxu0 0.0
    %410 = vmatpush1.msra.mxu0 %v57
    %411 = vmatprep.subr.mxu0 0.0
    %412 = vmatpush1.msra.mxu0 0.0
    %413 = vmatprep.subr.mxu0 0.0
    %414 = vmatpush1.msra.mxu0 0.0
    %415 = vmatprep.subr.mxu0 0.0
    %416 = vmatpush1.msra.mxu0 0.0
    %417 = vmatprep.subr.mxu0 0.0
    %418 = vmatpush1.msra.mxu0 0.0
    %419 = vmatprep.subr.mxu0 0.0
    %420 = vmatpush1.msra.mxu0 0.0
    %421 = vmatprep.subr.mxu0 0.0
    %422 = vmatpush1.msra.mxu0 0.0
    %423 = vmatprep.subr.mxu0 0.0
    %424 = vmatpush1.msra.mxu0 0.0
    %425 = vmatprep.subr.mxu0 0.0
    %426 = vmatpush1.msra.mxu0 0.0
    %427 = vmatprep.subr.mxu0 0.0
    %428 = vmatpush1.msra.mxu0 0.0
    %429 = vmatprep.subr.mxu0 0.0
    %430 = vmatpush1.msra.mxu0 0.0
    %431 = vmatprep.subr.mxu0 0.0
    %432 = vmatpush1.msra.mxu0 0.0
    %433 = vmatprep.subr.mxu0 0.0
    %434 = vmatpush1.msra.mxu0 0.0
    %435 = vmatprep.subr.mxu0 0.0
    %436 = vmatpush1.msra.mxu0 0.0
    %437 = vmatprep.subr.mxu0 0.0
    %438 = vmatpush1.msra.mxu0 0.0
    %439 = vmatprep.subr.mxu0 0.0
    %440 = vmatpush1.msra.mxu0 0.0
    %441 = vmatprep.subr.mxu0 0.0
    %442 = vmatpush1.msra.mxu0 0.0
    %443 = vmatprep.subr.mxu0 0.0
    %444 = vmatpush1.msra.mxu0 0.0
    %445 = vmatprep.subr.mxu0 0.0
    %446 = vmatpush1.msra.mxu0 0.0
    %447 = vmatprep.subr.mxu0 0.0
    %448 = vmatpush1.msra.mxu0 0.0
    %449 = vmatprep.subr.mxu0 0.0
    %450 = vmatpush1.msra.mxu0 0.0
    %451 = vmatprep.subr.mxu0 0.0
    %452 = vmatpush1.msra.mxu0 0.0
    %453 = vmatprep.subr.mxu0 0.0
    %454 = vmatpush1.msra.mxu0 0.0
    %455 = vmatprep.subr.mxu0 0.0
    %456 = vmatpush1.msra.mxu0 0.0
    %457 = vmatprep.subr.mxu0 0.0
    %458 = vmatpush1.msra.mxu0 0.0
    %459 = vmatprep.subr.mxu0 0.0
    %460 = vmatpush1.msra.mxu0 0.0
    %461 = vmatprep.subr.mxu0 0.0
    %462 = vmatpush1.msra.mxu0 0.0
    %463 = vmatprep.subr.mxu0 0.0
    %464 = vmatpush1.msra.mxu0 0.0
    %465 = vmatprep.subr.mxu0 0.0
    %466 = vmatpush1.msra.mxu0 0.0
    %467 = vmatprep.mubr.f32.mxu0 0.0
    %468 = vmatmul.mubr.f32.gmra.mrb[0].mxu0 %v331
    %v469 = vpop.f32.mrb[0].mxu0
    %v470 = vadd.f32 %v156, %v469
    %v471 = vpop.f32.mrb[0].mxu0
    %472 = vdwg.mxu0
    %473 = vmatprep.subr.mxu0 0.0
    %474 = vmatpush1.msra.mxu0 %v59
    %475 = vmatprep.subr.mxu0 0.0
    %476 = vmatpush1.msra.mxu0 %v60
    %477 = vmatprep.subr.mxu0 0.0
    %478 = vmatpush1.msra.mxu0 %v61
    %479 = vmatprep.subr.mxu0 0.0
    %480 = vmatpush1.msra.mxu0 %v62
    %481 = vmatprep.subr.mxu0 0.0
    %482 = vmatpush1.msra.mxu0 0.0
    %483 = vmatprep.subr.mxu0 0.0
    %484 = vmatpush1.msra.mxu0 0.0
    %485 = vmatprep.subr.mxu0 0.0
    %486 = vmatpush1.msra.mxu0 0.0
    %487 = vmatprep.subr.mxu0 0.0
    %488 = vmatpush1.msra.mxu0 0.0
    %489 = vmatprep.subr.mxu0 0.0
    %490 = vmatpush1.msra.mxu0 0.0
    %491 = vmatprep.subr.mxu0 0.0
    %492 = vmatpush1.msra.mxu0 0.0
    %493 = vmatprep.subr.mxu0 0.0
    %494 = vmatpush1.msra.mxu0 0.0
    %495 = vmatprep.subr.mxu0 0.0
    %496 = vmatpush1.msra.mxu0 0.0
    %497 = vmatprep.subr.mxu0 0.0
    %498 = vmatpush1.msra.mxu0 0.0
    %499 = vmatprep.subr.mxu0 0.0
    %500 = vmatpush1.msra.mxu0 0.0
    %501 = vmatprep.subr.mxu0 0.0
    %502 = vmatpush1.msra.mxu0 0.0
    %503 = vmatprep.subr.mxu0 0.0
    %504 = vmatpush1.msra.mxu0 0.0
    %505 = vmatprep.subr.mxu0 0.0
    %506 = vmatpush1.msra.mxu0 0.0
    %507 = vmatprep.subr.mxu0 0.0
    %508 = vmatpush1.msra.mxu0 0.0
    %509 = vmatprep.subr.mxu0 0.0
    %510 = vmatpush1.msra.mxu0 0.0
    %511 = vmatprep.subr.mxu0 0.0
    %512 = vmatpush1.msra.mxu0 0.0
    %513 = vmatprep.subr.mxu0 0.0
    %514 = vmatpush1.msra.mxu0 0.0
    %515 = vmatprep.subr.mxu0 0.0
    %516 = vmatpush1.msra.mxu0 0.0
    %517 = vmatprep.subr.mxu0 0.0
    %518 = vmatpush1.msra.mxu0 0.0
    %519 = vmatprep.subr.mxu0 0.0
    %520 = vmatpush1.msra.mxu0 0.0
    %521 = vmatprep.subr.mxu0 0.0
    %522 = vmatpush1.msra.mxu0 0.0
    %523 = vmatprep.subr.mxu0 0.0
    %524 = vmatpush1.msra.mxu0 0.0
    %525 = vmatprep.subr.mxu0 0.0
    %526 = vmatpush1.msra.mxu0 0.0
    %527 = vmatprep.subr.mxu0 0.0
    %528 = vmatpush1.msra.mxu0 0.0
    %529 = vmatprep.subr.mxu0 0.0
    %530 = vmatpush1.msra.mxu0 0.0
    %531 = vmatprep.subr.mxu0 0.0
    %532 = vmatpush1.msra.mxu0 0.0
    %533 = vmatprep.subr.mxu0 0.0
    %534 = vmatpush1.msra.mxu0 0.0
    %535 = vmatprep.subr.mxu0 0.0
    %536 = vmatpush1.msra.mxu0 0.0
    %537 = vmatprep.mubr.f32.mxu0 0.0
    %538 = vmatmul.mubr.f32.gmra.mrb[0].mxu0 %v331
    %v539 = vpop.f32.mrb[0].mxu0
    %v540 = vadd.f32 %v232, %v539
    %v541 = vpop.f32.mrb[0].mxu0
    %542 = vdwg.mxu0
    %v543 = vadd.f32 %v327, %v400
    %v544 = vxor.u32 %v543, 2147483648
    %v545 = vmul.f32 %v544, 1.442695
    %v546 = vpow.pop %v545
    %v547 = vadd.f32 %v546, 1.0
    %v548 = vrcp.pop %v547
    %v549 = vmul.f32 1.0, %v548
    %v550 = vadd.f32 %v328, %v470
    %v551 = vxor.u32 %v550, 2147483648
    %v552 = vmul.f32 %v551, 1.442695
    %v553 = vpow.pop %v552
    %v554 = vadd.f32 %v553, 1.0
    %v555 = vrcp.pop %v554
    %v556 = vmul.f32 1.0, %v555
    %v557 = vmul.f32 %v549, %v540
    %v558 = vadd.f32 %v329, %v557
    %v559 = vtanh.pop %v558
    %v560 = vsub.f32 1.0, %v556
    %v561 = vmul.f32 %v560, %v559
    %v562 = vmul.f32 %v556, %v324
    %v563 = vadd.f32 %v561, %v562
    %s564 = scalar_lea.vmem [#allocation8], 8
    %565 = vst.msk [vmem:[%s564] sm:$0xff] %vm78, %v563
    %s566 = scalar_lea.vmem [#allocation3], 48
    %v567 = vld [vmem:[%s566] sm:$0xff]
    %v568 = vld [vmem:[%s566 + $0x8] sm:$0xff]
    %v569 = vld [vmem:[%s566 + $0x10] sm:$0xff]
    %v571 = vsel %vm78, %v563, 0
    %573 = vmatprep.subr.mxu0 0.0
    %574 = vmatpush1.msra.mxu0 %v49
    %575 = vmatprep.subr.mxu0 0.0
    %576 = vmatpush1.msra.mxu0 %v50
    %577 = vmatprep.subr.mxu0 0.0
    %578 = vmatpush1.msra.mxu0 %v51
    %579 = vmatprep.subr.mxu0 0.0
    %580 = vmatpush1.msra.mxu0 %v52
    %581 = vmatprep.subr.mxu0 0.0
    %582 = vmatpush1.msra.mxu0 0.0
    %583 = vmatprep.subr.mxu0 0.0
    %584 = vmatpush1.msra.mxu0 0.0
    %585 = vmatprep.subr.mxu0 0.0
    %586 = vmatpush1.msra.mxu0 0.0
    %587 = vmatprep.subr.mxu0 0.0
    %588 = vmatpush1.msra.mxu0 0.0
    %589 = vmatprep.subr.mxu0 0.0
    %590 = vmatpush1.msra.mxu0 0.0
    %591 = vmatprep.subr.mxu0 0.0
    %592 = vmatpush1.msra.mxu0 0.0
    %593 = vmatprep.subr.mxu0 0.0
    %594 = vmatpush1.msra.mxu0 0.0
    %595 = vmatprep.subr.mxu0 0.0
    %596 = vmatpush1.msra.mxu0 0.0
    %597 = vmatprep.subr.mxu0 0.0
    %598 = vmatpush1.msra.mxu0 0.0
    %599 = vmatprep.subr.mxu0 0.0
    %600 = vmatpush1.msra.mxu0 0.0
    %601 = vmatprep.subr.mxu0 0.0
    %602 = vmatpush1.msra.mxu0 0.0
    %603 = vmatprep.subr.mxu0 0.0
    %604 = vmatpush1.msra.mxu0 0.0
    %605 = vmatprep.subr.mxu0 0.0
    %606 = vmatpush1.msra.mxu0 0.0
    %607 = vmatprep.subr.mxu0 0.0
    %608 = vmatpush1.msra.mxu0 0.0
    %609 = vmatprep.subr.mxu0 0.0
    %610 = vmatpush1.msra.mxu0 0.0
    %611 = vmatprep.subr.mxu0 0.0
    %612 = vmatpush1.msra.mxu0 0.0
    %613 = vmatprep.subr.mxu0 0.0
    %614 = vmatpush1.msra.mxu0 0.0
    %615 = vmatprep.subr.mxu0 0.0
    %616 = vmatpush1.msra.mxu0 0.0
    %617 = vmatprep.subr.mxu0 0.0
    %618 = vmatpush1.msra.mxu0 0.0
    %619 = vmatprep.subr.mxu0 0.0
    %620 = vmatpush1.msra.mxu0 0.0
    %621 = vmatprep.subr.mxu0 0.0
    %622 = vmatpush1.msra.mxu0 0.0
    %623 = vmatprep.subr.mxu0 0.0
    %624 = vmatpush1.msra.mxu0 0.0
    %625 = vmatprep.subr.mxu0 0.0
    %626 = vmatpush1.msra.mxu0 0.0
    %627 = vmatprep.subr.mxu0 0.0
    %628 = vmatpush1.msra.mxu0 0.0
    %629 = vmatprep.subr.mxu0 0.0
    %630 = vmatpush1.msra.mxu0 0.0
    %631 = vmatprep.subr.mxu0 0.0
    %632 = vmatpush1.msra.mxu0 0.0
    %633 = vmatprep.subr.mxu0 0.0
    %634 = vmatpush1.msra.mxu0 0.0
    %635 = vmatprep.subr.mxu0 0.0
    %636 = vmatpush1.msra.mxu0 0.0
    %637 = vmatprep.mubr.f32.mxu0 0.0
    %638 = vmatmul.mubr.f32.gmra.mrb[0].mxu0 %v571
    %v639 = vpop.f32.mrb[0].mxu0
    %v640 = vadd.f32 %v76, %v639
    %v641 = vpop.f32.mrb[0].mxu0
    %642 = vdwg.mxu0
    %643 = vmatprep.subr.mxu0 0.0
    %644 = vmatpush1.msra.mxu0 %v54
    %645 = vmatprep.subr.mxu0 0.0
    %646 = vmatpush1.msra.mxu0 %v55
    %647 = vmatprep.subr.mxu0 0.0
    %648 = vmatpush1.msra.mxu0 %v56
    %649 = vmatprep.subr.mxu0 0.0
    %650 = vmatpush1.msra.mxu0 %v57
    %651 = vmatprep.subr.mxu0 0.0
    %652 = vmatpush1.msra.mxu0 0.0
    %653 = vmatprep.subr.mxu0 0.0
    %654 = vmatpush1.msra.mxu0 0.0
    %655 = vmatprep.subr.mxu0 0.0
    %656 = vmatpush1.msra.mxu0 0.0
    %657 = vmatprep.subr.mxu0 0.0
    %658 = vmatpush1.msra.mxu0 0.0
    %659 = vmatprep.subr.mxu0 0.0
    %660 = vmatpush1.msra.mxu0 0.0
    %661 = vmatprep.subr.mxu0 0.0
    %662 = vmatpush1.msra.mxu0 0.0
    %663 = vmatprep.subr.mxu0 0.0
    %664 = vmatpush1.msra.mxu0 0.0
    %665 = vmatprep.subr.mxu0 0.0
    %666 = vmatpush1.msra.mxu0 0.0
    %667 = vmatprep.subr.mxu0 0.0
    %668 = vmatpush1.msra.mxu0 0.0
    %669 = vmatprep.subr.mxu0 0.0
    %670 = vmatpush1.msra.mxu0 0.0
    %671 = vmatprep.subr.mxu0 0.0
    %672 = vmatpush1.msra.mxu0 0.0
    %673 = vmatprep.subr.mxu0 0.0
    %674 = vmatpush1.msra.mxu0 0.0
    %675 = vmatprep.subr.mxu0 0.0
    %676 = vmatpush1.msra.mxu0 0.0
    %677 = vmatprep.subr.mxu0 0.0
    %678 = vmatpush1.msra.mxu0 0.0
    %679 = vmatprep.subr.mxu0 0.0
    %680 = vmatpush1.msra.mxu0 0.0
    %681 = vmatprep.subr.mxu0 0.0
    %682 = vmatpush1.msra.mxu0 0.0
    %683 = vmatprep.subr.mxu0 0.0
    %684 = vmatpush1.msra.mxu0 0.0
    %685 = vmatprep.subr.mxu0 0.0
    %686 = vmatpush1.msra.mxu0 0.0
    %687 = vmatprep.subr.mxu0 0.0
    %688 = vmatpush1.msra.mxu0 0.0
    %689 = vmatprep.subr.mxu0 0.0
    %690 = vmatpush1.msra.mxu0 0.0
    %691 = vmatprep.subr.mxu0 0.0
    %692 = vmatpush1.msra.mxu0 0.0
    %693 = vmatprep.subr.mxu0 0.0
    %694 = vmatpush1.msra.mxu0 0.0
    %695 = vmatprep.subr.mxu0 0.0
    %696 = vmatpush1.msra.mxu0 0.0
    %697 = vmatprep.subr.mxu0 0.0
    %698 = vmatpush1.msra.mxu0 0.0
    %699 = vmatprep.subr.mxu0 0.0
    %700 = vmatpush1.msra.mxu0 0.0
    %701 = vmatprep.subr.mxu0 0.0
    %702 = vmatpush1.msra.mxu0 0.0
    %703 = vmatprep.subr.mxu0 0.0
    %704 = vmatpush1.msra.mxu0 0.0
    %705 = vmatprep.subr.mxu0 0.0
    %706 = vmatpush1.msra.mxu0 0.0
    %707 = vmatprep.mubr.f32.mxu0 0.0
    %708 = vmatmul.mubr.f32.gmra.mrb[0].mxu0 %v571
    %v709 = vpop.f32.mrb[0].mxu0
    %v710 = vadd.f32 %v156, %v709
    %v711 = vpop.f32.mrb[0].mxu0
    %712 = vdwg.mxu0
    %713 = vmatprep.subr.mxu0 0.0
    %714 = vmatpush1.msra.mxu0 %v59
    %715 = vmatprep.subr.mxu0 0.0
    %716 = vmatpush1.msra.mxu0 %v60
    %717 = vmatprep.subr.mxu0 0.0
    %718 = vmatpush1.msra.mxu0 %v61
    %719 = vmatprep.subr.mxu0 0.0
    %720 = vmatpush1.msra.mxu0 %v62
    %721 = vmatprep.subr.mxu0 0.0
    %722 = vmatpush1.msra.mxu0 0.0
    %723 = vmatprep.subr.mxu0 0.0
    %724 = vmatpush1.msra.mxu0 0.0
    %725 = vmatprep.subr.mxu0 0.0
    %726 = vmatpush1.msra.mxu0 0.0
    %727 = vmatprep.subr.mxu0 0.0
    %728 = vmatpush1.msra.mxu0 0.0
    %729 = vmatprep.subr.mxu0 0.0
    %730 = vmatpush1.msra.mxu0 0.0
    %731 = vmatprep.subr.mxu0 0.0
    %732 = vmatpush1.msra.mxu0 0.0
    %733 = vmatprep.subr.mxu0 0.0
    %734 = vmatpush1.msra.mxu0 0.0
    %735 = vmatprep.subr.mxu0 0.0
    %736 = vmatpush1.msra.mxu0 0.0
    %737 = vmatprep.subr.mxu0 0.0
    %738 = vmatpush1.msra.mxu0 0.0
    %739 = vmatprep.subr.mxu0 0.0
    %740 = vmatpush1.msra.mxu0 0.0
    %741 = vmatprep.subr.mxu0 0.0
    %742 = vmatpush1.msra.mxu0 0.0
    %743 = vmatprep.subr.mxu0 0.0
    %744 = vmatpush1.msra.mxu0 0.0
    %745 = vmatprep.subr.mxu0 0.0
    %746 = vmatpush1.msra.mxu0 0.0
    %747 = vmatprep.subr.mxu0 0.0
    %748 = vmatpush1.msra.mxu0 0.0
    %749 = vmatprep.subr.mxu0 0.0
    %750 = vmatpush1.msra.mxu0 0.0
    %751 = vmatprep.subr.mxu0 0.0
    %752 = vmatpush1.msra.mxu0 0.0
    %753 = vmatprep.subr.mxu0 0.0
    %754 = vmatpush1.msra.mxu0 0.0
    %755 = vmatprep.subr.mxu0 0.0
    %756 = vmatpush1.msra.mxu0 0.0
    %757 = vmatprep.subr.mxu0 0.0
    %758 = vmatpush1.msra.mxu0 0.0
    %759 = vmatprep.subr.mxu0 0.0
    %760 = vmatpush1.msra.mxu0 0.0
    %761 = vmatprep.subr.mxu0 0.0
    %762 = vmatpush1.msra.mxu0 0.0
    %763 = vmatprep.subr.mxu0 0.0
    %764 = vmatpush1.msra.mxu0 0.0
    %765 = vmatprep.subr.mxu0 0.0
    %766 = vmatpush1.msra.mxu0 0.0
    %767 = vmatprep.subr.mxu0 0.0
    %768 = vmatpush1.msra.mxu0 0.0
    %769 = vmatprep.subr.mxu0 0.0
    %770 = vmatpush1.msra.mxu0 0.0
    %771 = vmatprep.subr.mxu0 0.0
    %772 = vmatpush1.msra.mxu0 0.0
    %773 = vmatprep.subr.mxu0 0.0
    %774 = vmatpush1.msra.mxu0 0.0
    %775 = vmatprep.subr.mxu0 0.0
    %776 = vmatpush1.msra.mxu0 0.0
    %777 = vmatprep.mubr.f32.mxu0 0.0
    %778 = vmatmul.mubr.f32.gmra.mrb[0].mxu0 %v571
    %v779 = vpop.f32.mrb[0].mxu0
    %v780 = vadd.f32 %v232, %v779
    %v781 = vpop.f32.mrb[0].mxu0
    %782 = vdwg.mxu0
    %v783 = vadd.f32 %v567, %v640
    %v784 = vxor.u32 %v783, 2147483648
    %v785 = vmul.f32 %v784, 1.442695
    %v786 = vpow.pop %v785
    %v787 = vadd.f32 %v786, 1.0
    %v788 = vrcp.pop %v787
    %v789 = vmul.f32 1.0, %v788
    %v790 = vadd.f32 %v568, %v710
    %v791 = vxor.u32 %v790, 2147483648
    %v792 = vmul.f32 %v791, 1.442695
    %v793 = vpow.pop %v792
    %v794 = vadd.f32 %v793, 1.0
    %v795 = vrcp.pop %v794
    %v796 = vmul.f32 1.0, %v795
    %v797 = vmul.f32 %v789, %v780
    %v798 = vadd.f32 %v569, %v797
    %v799 = vtanh.pop %v798
    %v800 = vsub.f32 1.0, %v796
    %v801 = vmul.f32 %v800, %v799
    %v802 = vmul.f32 %v796, %v563
    %v803 = vadd.f32 %v801, %v802
    %s804 = scalar_lea.vmem [#allocation8], 16
    %805 = vst.msk [vmem:[%s804] sm:$0xff] %vm78, %v803
    %s806 = scalar_lea.vmem [#allocation3], 72
    %v807 = vld [vmem:[%s806] sm:$0xff]
    %v808 = vld [vmem:[%s806 + $0x8] sm:$0xff]
    %v809 = vld [vmem:[%s806 + $0x10] sm:$0xff]
    %v811 = vsel %vm78, %v803, 0
    %813 = vmatprep.subr.mxu0 0.0
    %814 = vmatpush1.msra.mxu0 %v49
    %815 = vmatprep.subr.mxu0 0.0
    %816 = vmatpush1.msra.mxu0 %v50
    %817 = vmatprep.subr.mxu0 0.0
    %818 = vmatpush1.msra.mxu0 %v51
    %819 = vmatprep.subr.mxu0 0.0
    %820 = vmatpush1.msra.mxu0 %v52
    %821 = vmatprep.subr.mxu0 0.0
    %822 = vmatpush1.msra.mxu0 0.0
    %823 = vmatprep.subr.mxu0 0.0
    %824 = vmatpush1.msra.mxu0 0.0
    %825 = vmatprep.subr.mxu0 0.0
    %826 = vmatpush1.msra.mxu0 0.0
    %827 = vmatprep.subr.mxu0 0.0
    %828 = vmatpush1.msra.mxu0 0.0
    %829 = vmatprep.subr.mxu0 0.0
    %830 = vmatpush1.msra.mxu0 0.0
    %831 = vmatprep.subr.mxu0 0.0
    %832 = vmatpush1.msra.mxu0 0.0
    %833 = vmatprep.subr.mxu0 0.0
    %834 = vmatpush1.msra.mxu0 0.0
    %835 = vmatprep.subr.mxu0 0.0
    %836 = vmatpush1.msra.mxu0 0.0
    %837 = vmatprep.subr.mxu0 0.0
    %838 = vmatpush1.msra.mxu0 0.0
    %839 = vmatprep.subr.mxu0 0.0
    %840 = vmatpush1.msra.mxu0 0.0
    %841 = vmatprep.subr.mxu0 0.0
    %842 = vmatpush1.msra.mxu0 0.0
    %843 = vmatprep.subr.mxu0 0.0
    %844 = vmatpush1.msra.mxu0 0.0
    %845 = vmatprep.subr.mxu0 0.0
    %846 = vmatpush1.msra.mxu0 0.0
    %847 = vmatprep.subr.mxu0 0.0
    %848 = vmatpush1.msra.mxu0 0.0
    %849 = vmatprep.subr.mxu0 0.0
    %850 = vmatpush1.msra.mxu0 0.0
    %851 = vmatprep.subr.mxu0 0.0
    %852 = vmatpush1.msra.mxu0 0.0
    %853 = vmatprep.subr.mxu0 0.0
    %854 = vmatpush1.msra.mxu0 0.0
    %855 = vmatprep.subr.mxu0 0.0
    %856 = vmatpush1.msra.mxu0 0.0
    %857 = vmatprep.subr.mxu0 0.0
    %858 = vmatpush1.msra.mxu0 0.0
    %859 = vmatprep.subr.mxu0 0.0
    %860 = vmatpush1.msra.mxu0 0.0
    %861 = vmatprep.subr.mxu0 0.0
    %862 = vmatpush1.msra.mxu0 0.0
    %863 = vmatprep.subr.mxu0 0.0
    %864 = vmatpush1.msra.mxu0 0.0
    %865 = vmatprep.subr.mxu0 0.0
    %866 = vmatpush1.msra.mxu0 0.0
    %867 = vmatprep.subr.mxu0 0.0
    %868 = vmatpush1.msra.mxu0 0.0
    %869 = vmatprep.subr.mxu0 0.0
    %870 = vmatpush1.msra.mxu0 0.0
    %871 = vmatprep.subr.mxu0 0.0
    %872 = vmatpush1.msra.mxu0 0.0
    %873 = vmatprep.subr.mxu0 0.0
    %874 = vmatpush1.msra.mxu0 0.0
    %875 = vmatprep.subr.mxu0 0.0
    %876 = vmatpush1.msra.mxu0 0.0
    %877 = vmatprep.mubr.f32.mxu0 0.0
    %878 = vmatmul.mubr.f32.gmra.mrb[0].mxu0 %v811
    %v879 = vpop.f32.mrb[0].mxu0
    %v880 = vadd.f32 %v76, %v879
    %v881 = vpop.f32.mrb[0].mxu0
    %882 = vdwg.mxu0
    %883 = vmatprep.subr.mxu0 0.0
    %884 = vmatpush1.msra.mxu0 %v54
    %885 = vmatprep.subr.mxu0 0.0
    %886 = vmatpush1.msra.mxu0 %v55
    %887 = vmatprep.subr.mxu0 0.0
    %888 = vmatpush1.msra.mxu0 %v56
    %889 = vmatprep.subr.mxu0 0.0
    %890 = vmatpush1.msra.mxu0 %v57
    %891 = vmatprep.subr.mxu0 0.0
    %892 = vmatpush1.msra.mxu0 0.0
    %893 = vmatprep.subr.mxu0 0.0
    %894 = vmatpush1.msra.mxu0 0.0
    %895 = vmatprep.subr.mxu0 0.0
    %896 = vmatpush1.msra.mxu0 0.0
    %897 = vmatprep.subr.mxu0 0.0
    %898 = vmatpush1.msra.mxu0 0.0
    %899 = vmatprep.subr.mxu0 0.0
    %900 = vmatpush1.msra.mxu0 0.0
    %901 = vmatprep.subr.mxu0 0.0
    %902 = vmatpush1.msra.mxu0 0.0
    %903 = vmatprep.subr.mxu0 0.0
    %904 = vmatpush1.msra.mxu0 0.0
    %905 = vmatprep.subr.mxu0 0.0
    %906 = vmatpush1.msra.mxu0 0.0
    %907 = vmatprep.subr.mxu0 0.0
    %908 = vmatpush1.msra.mxu0 0.0
    %909 = vmatprep.subr.mxu0 0.0
    %910 = vmatpush1.msra.mxu0 0.0
    %911 = vmatprep.subr.mxu0 0.0
    %912 = vmatpush1.msra.mxu0 0.0
    %913 = vmatprep.subr.mxu0 0.0
    %914 = vmatpush1.msra.mxu0 0.0
    %915 = vmatprep.subr.mxu0 0.0
    %916 = vmatpush1.msra.mxu0 0.0
    %917 = vmatprep.subr.mxu0 0.0
    %918 = vmatpush1.msra.mxu0 0.0
    %919 = vmatprep.subr.mxu0 0.0
    %920 = vmatpush1.msra.mxu0 0.0
    %921 = vmatprep.subr.mxu0 0.0
    %922 = vmatpush1.msra.mxu0 0.0
    %923 = vmatprep.subr.mxu0 0.0
    %924 = vmatpush1.msra.mxu0 0.0
    %925 = vmatprep.subr.mxu0 0.0
    %926 = vmatpush1.msra.mxu0 0.0
    %927 = vmatprep.subr.mxu0 0.0
    %928 = vmatpush1.msra.mxu0 0.0
    %929 = vmatprep.subr.mxu0 0.0
    %930 = vmatpush1.msra.mxu0 0.0
    %931 = vmatprep.subr.mxu0 0.0
    %932 = vmatpush1.msra.mxu0 0.0
    %933 = vmatprep.subr.mxu0 0.0
    %934 = vmatpush1.msra.mxu0 0.0
    %935 = vmatprep.subr.mxu0 0.0
    %936 = vmatpush1.msra.mxu0 0.0
    %937 = vmatprep.subr.mxu0 0.0
    %938 = vmatpush1.msra.mxu0 0.0
    %939 = vmatprep.subr.mxu0 0.0
    %940 = vmatpush1.msra.mxu0 0.0
    %941 = vmatprep.subr.mxu0 0.0
    %942 = vmatpush1.msra.mxu0 0.0
    %943 = vmatprep.subr.mxu0 0.0
    %944 = vmatpush1.msra.mxu0 0.0
    %945 = vmatprep.subr.mxu0 0.0
    %946 = vmatpush1.msra.mxu0 0.0
    %947 = vmatprep.mubr.f32.mxu0 0.0
    %948 = vmatmul.mubr.f32.gmra.mrb[0].mxu0 %v811
    %v949 = vpop.f32.mrb[0].mxu0
    %v950 = vadd.f32 %v156, %v949
    %v951 = vpop.f32.mrb[0].mxu0
    %952 = vdwg.mxu0
    %953 = vmatprep.subr.mxu0 0.0
    %954 = vmatpush1.msra.mxu0 %v59
    %955 = vmatprep.subr.mxu0 0.0
    %956 = vmatpush1.msra.mxu0 %v60
    %957 = vmatprep.subr.mxu0 0.0
    %958 = vmatpush1.msra.mxu0 %v61
    %959 = vmatprep.subr.mxu0 0.0
    %960 = vmatpush1.msra.mxu0 %v62
    %961 = vmatprep.subr.mxu0 0.0
    %962 = vmatpush1.msra.mxu0 0.0
    %963 = vmatprep.subr.mxu0 0.0
    %964 = vmatpush1.msra.mxu0 0.0
    %965 = vmatprep.subr.mxu0 0.0
    %966 = vmatpush1.msra.mxu0 0.0
    %967 = vmatprep.subr.mxu0 0.0
    %968 = vmatpush1.msra.mxu0 0.0
    %969 = vmatprep.subr.mxu0 0.0
    %970 = vmatpush1.msra.mxu0 0.0
    %971 = vmatprep.subr.mxu0 0.0
    %972 = vmatpush1.msra.mxu0 0.0
    %973 = vmatprep.subr.mxu0 0.0
    %974 = vmatpush1.msra.mxu0 0.0
    %975 = vmatprep.subr.mxu0 0.0
    %976 = vmatpush1.msra.mxu0 0.0
    %977 = vmatprep.subr.mxu0 0.0
    %978 = vmatpush1.msra.mxu0 0.0
    %979 = vmatprep.subr.mxu0 0.0
    %980 = vmatpush1.msra.mxu0 0.0
    %981 = vmatprep.subr.mxu0 0.0
    %982 = vmatpush1.msra.mxu0 0.0
    %983 = vmatprep.subr.mxu0 0.0
    %984 = vmatpush1.msra.mxu0 0.0
    %985 = vmatprep.subr.mxu0 0.0
    %986 = vmatpush1.msra.mxu0 0.0
    %987 = vmatprep.subr.mxu0 0.0
    %988 = vmatpush1.msra.mxu0 0.0
    %989 = vmatprep.subr.mxu0 0.0
    %990 = vmatpush1.msra.mxu0 0.0
    %991 = vmatprep.subr.mxu0 0.0
    %992 = vmatpush1.msra.mxu0 0.0
    %993 = vmatprep.subr.mxu0 0.0
    %994 = vmatpush1.msra.mxu0 0.0
    %995 = vmatprep.subr.mxu0 0.0
    %996 = vmatpush1.msra.mxu0 0.0
    %997 = vmatprep.subr.mxu0 0.0
    %998 = vmatpush1.msra.mxu0 0.0
    %999 = vmatprep.subr.mxu0 0.0
    %1000 = vmatpush1.msra.mxu0 0.0
    %1001 = vmatprep.subr.mxu0 0.0
    %1002 = vmatpush1.msra.mxu0 0.0
    %1003 = vmatprep.subr.mxu0 0.0
    %1004 = vmatpush1.msra.mxu0 0.0
    %1005 = vmatprep.subr.mxu0 0.0
    %1006 = vmatpush1.msra.mxu0 0.0
    %1007 = vmatprep.subr.mxu0 0.0
    %1008 = vmatpush1.msra.mxu0 0.0
    %1009 = vmatprep.subr.mxu0 0.0
    %1010 = vmatpush1.msra.mxu0 0.0
    %1011 = vmatprep.subr.mxu0 0.0
    %1012 = vmatpush1.msra.mxu0 0.0
    %1013 = vmatprep.subr.mxu0 0.0
    %1014 = vmatpush1.msra.mxu0 0.0
    %1015 = vmatprep.subr.mxu0 0.0
    %1016 = vmatpush1.msra.mxu0 0.0
    %1017 = vmatprep.mubr.f32.mxu0 0.0
    %1018 = vmatmul.mubr.f32.gmra.mrb[0].mxu0 %v811
    %v1019 = vpop.f32.mrb[0].mxu0
    %v1020 = vadd.f32 %v232, %v1019
    %v1021 = vpop.f32.mrb[0].mxu0
    %1022 = vdwg.mxu0
    %v1023 = vadd.f32 %v807, %v880
    %v1024 = vxor.u32 %v1023, 2147483648
    %v1025 = vmul.f32 %v1024, 1.442695
    %v1026 = vpow.pop %v1025
    %v1027 = vadd.f32 %v1026, 1.0
    %v1028 = vrcp.pop %v1027
    %v1029 = vmul.f32 1.0, %v1028
    %v1030 = vadd.f32 %v808, %v950
    %v1031 = vxor.u32 %v1030, 2147483648
    %v1032 = vmul.f32 %v1031, 1.442695
    %v1033 = vpow.pop %v1032
    %v1034 = vadd.f32 %v1033, 1.0
    %v1035 = vrcp.pop %v1034
    %v1036 = vmul.f32 1.0, %v1035
    %v1037 = vmul.f32 %v1029, %v1020
    %v1038 = vadd.f32 %v809, %v1037
    %v1039 = vtanh.pop %v1038
    %v1040 = vsub.f32 1.0, %v1036
    %v1041 = vmul.f32 %v1040, %v1039
    %v1042 = vmul.f32 %v1036, %v803
    %v1043 = vadd.f32 %v1041, %v1042
    %s1044 = scalar_lea.vmem [#allocation8], 24
    %1045 = vst.msk [vmem:[%s1044] sm:$0xff] %vm78, %v1043
    %s1046 = scalar_lea.vmem [#allocation3], 96
    %v1047 = vld [vmem:[%s1046] sm:$0xff]
    %v1048 = vld [vmem:[%s1046 + $0x8] sm:$0xff]
    %v1049 = vld [vmem:[%s1046 + $0x10] sm:$0xff]
    %v1051 = vsel %vm78, %v1043, 0
    %1053 = vmatprep.subr.mxu0 0.0
    %1054 = vmatpush1.msra.mxu0 %v49
    %1055 = vmatprep.subr.mxu0 0.0
    %1056 = vmatpush1.msra.mxu0 %v50
    %1057 = vmatprep.subr.mxu0 0.0
    %1058 = vmatpush1.msra.mxu0 %v51
    %1059 = vmatprep.subr.mxu0 0.0
    %1060 = vmatpush1.msra.mxu0 %v52
    %1061 = vmatprep.subr.mxu0 0.0
    %1062 = vmatpush1.msra.mxu0 0.0
    %1063 = vmatprep.subr.mxu0 0.0
    %1064 = vmatpush1.msra.mxu0 0.0
    %1065 = vmatprep.subr.mxu0 0.0
    %1066 = vmatpush1.msra.mxu0 0.0
    %1067 = vmatprep.subr.mxu0 0.0
    %1068 = vmatpush1.msra.mxu0 0.0
    %1069 = vmatprep.subr.mxu0 0.0
    %1070 = vmatpush1.msra.mxu0 0.0
    %1071 = vmatprep.subr.mxu0 0.0
    %1072 = vmatpush1.msra.mxu0 0.0
    %1073 = vmatprep.subr.mxu0 0.0
    %1074 = vmatpush1.msra.mxu0 0.0
    %1075 = vmatprep.subr.mxu0 0.0
    %1076 = vmatpush1.msra.mxu0 0.0
    %1077 = vmatprep.subr.mxu0 0.0
    %1078 = vmatpush1.msra.mxu0 0.0
    %1079 = vmatprep.subr.mxu0 0.0
    %1080 = vmatpush1.msra.mxu0 0.0
    %1081 = vmatprep.subr.mxu0 0.0
    %1082 = vmatpush1.msra.mxu0 0.0
    %1083 = vmatprep.subr.mxu0 0.0
    %1084 = vmatpush1.msra.mxu0 0.0
    %1085 = vmatprep.subr.mxu0 0.0
    %1086 = vmatpush1.msra.mxu0 0.0
    %1087 = vmatprep.subr.mxu0 0.0
    %1088 = vmatpush1.msra.mxu0 0.0
    %1089 = vmatprep.subr.mxu0 0.0
    %1090 = vmatpush1.msra.mxu0 0.0
    %1091 = vmatprep.subr.mxu0 0.0
    %1092 = vmatpush1.msra.mxu0 0.0
    %1093 = vmatprep.subr.mxu0 0.0
    %1094 = vmatpush1.msra.mxu0 0.0
    %1095 = vmatprep.subr.mxu0 0.0
    %1096 = vmatpush1.msra.mxu0 0.0
    %1097 = vmatprep.subr.mxu0 0.0
    %1098 = vmatpush1.msra.mxu0 0.0
    %1099 = vmatprep.subr.mxu0 0.0
    %1100 = vmatpush1.msra.mxu0 0.0
    %1101 = vmatprep.subr.mxu0 0.0
    %1102 = vmatpush1.msra.mxu0 0.0
    %1103 = vmatprep.subr.mxu0 0.0
    %1104 = vmatpush1.msra.mxu0 0.0
    %1105 = vmatprep.subr.mxu0 0.0
    %1106 = vmatpush1.msra.mxu0 0.0
    %1107 = vmatprep.subr.mxu0 0.0
    %1108 = vmatpush1.msra.mxu0 0.0
    %1109 = vmatprep.subr.mxu0 0.0
    %1110 = vmatpush1.msra.mxu0 0.0
    %1111 = vmatprep.subr.mxu0 0.0
    %1112 = vmatpush1.msra.mxu0 0.0
    %1113 = vmatprep.subr.mxu0 0.0
    %1114 = vmatpush1.msra.mxu0 0.0
    %1115 = vmatprep.subr.mxu0 0.0
    %1116 = vmatpush1.msra.mxu0 0.0
    %1117 = vmatprep.mubr.f32.mxu0 0.0
    %1118 = vmatmul.mubr.f32.gmra.mrb[0].mxu0 %v1051
    %v1119 = vpop.f32.mrb[0].mxu0
    %v1120 = vadd.f32 %v76, %v1119
    %v1121 = vpop.f32.mrb[0].mxu0
    %1122 = vdwg.mxu0
    %1123 = vmatprep.subr.mxu0 0.0
    %1124 = vmatpush1.msra.mxu0 %v54
    %1125 = vmatprep.subr.mxu0 0.0
    %1126 = vmatpush1.msra.mxu0 %v55
    %1127 = vmatprep.subr.mxu0 0.0
    %1128 = vmatpush1.msra.mxu0 %v56
    %1129 = vmatprep.subr.mxu0 0.0
    %1130 = vmatpush1.msra.mxu0 %v57
    %1131 = vmatprep.subr.mxu0 0.0
    %1132 = vmatpush1.msra.mxu0 0.0
    %1133 = vmatprep.subr.mxu0 0.0
    %1134 = vmatpush1.msra.mxu0 0.0
    %1135 = vmatprep.subr.mxu0 0.0
    %1136 = vmatpush1.msra.mxu0 0.0
    %1137 = vmatprep.subr.mxu0 0.0
    %1138 = vmatpush1.msra.mxu0 0.0
    %1139 = vmatprep.subr.mxu0 0.0
    %1140 = vmatpush1.msra.mxu0 0.0
    %1141 = vmatprep.subr.mxu0 0.0
    %1142 = vmatpush1.msra.mxu0 0.0
    %1143 = vmatprep.subr.mxu0 0.0
    %1144 = vmatpush1.msra.mxu0 0.0
    %1145 = vmatprep.subr.mxu0 0.0
    %1146 = vmatpush1.msra.mxu0 0.0
    %1147 = vmatprep.subr.mxu0 0.0
    %1148 = vmatpush1.msra.mxu0 0.0
    %1149 = vmatprep.subr.mxu0 0.0
    %1150 = vmatpush1.msra.mxu0 0.0
    %1151 = vmatprep.subr.mxu0 0.0
    %1152 = vmatpush1.msra.mxu0 0.0
    %1153 = vmatprep.subr.mxu0 0.0
    %1154 = vmatpush1.msra.mxu0 0.0
    %1155 = vmatprep.subr.mxu0 0.0
    %1156 = vmatpush1.msra.mxu0 0.0
    %1157 = vmatprep.subr.mxu0 0.0
    %1158 = vmatpush1.msra.mxu0 0.0
    %1159 = vmatprep.subr.mxu0 0.0
    %1160 = vmatpush1.msra.mxu0 0.0
    %1161 = vmatprep.subr.mxu0 0.0
    %1162 = vmatpush1.msra.mxu0 0.0
    %1163 = vmatprep.subr.mxu0 0.0
    %1164 = vmatpush1.msra.mxu0 0.0
    %1165 = vmatprep.subr.mxu0 0.0
    %1166 = vmatpush1.msra.mxu0 0.0
    %1167 = vmatprep.subr.mxu0 0.0
    %1168 = vmatpush1.msra.mxu0 0.0
    %1169 = vmatprep.subr.mxu0 0.0
    %1170 = vmatpush1.msra.mxu0 0.0
    %1171 = vmatprep.subr.mxu0 0.0
    %1172 = vmatpush1.msra.mxu0 0.0
    %1173 = vmatprep.subr.mxu0 0.0
    %1174 = vmatpush1.msra.mxu0 0.0
    %1175 = vmatprep.subr.mxu0 0.0
    %1176 = vmatpush1.msra.mxu0 0.0
    %1177 = vmatprep.subr.mxu0 0.0
    %1178 = vmatpush1.msra.mxu0 0.0
    %1179 = vmatprep.subr.mxu0 0.0
    %1180 = vmatpush1.msra.mxu0 0.0
    %1181 = vmatprep.subr.mxu0 0.0
    %1182 = vmatpush1.msra.mxu0 0.0
    %1183 = vmatprep.subr.mxu0 0.0
    %1184 = vmatpush1.msra.mxu0 0.0
    %1185 = vmatprep.subr.mxu0 0.0
    %1186 = vmatpush1.msra.mxu0 0.0
    %1187 = vmatprep.mubr.f32.mxu0 0.0
    %1188 = vmatmul.mubr.f32.gmra.mrb[0].mxu0 %v1051
    %v1189 = vpop.f32.mrb[0].mxu0
    %v1190 = vadd.f32 %v156, %v1189
    %v1191 = vpop.f32.mrb[0].mxu0
    %1192 = vdwg.mxu0
    %1193 = vmatprep.subr.mxu0 0.0
    %1194 = vmatpush1.msra.mxu0 %v59
    %1195 = vmatprep.subr.mxu0 0.0
    %1196 = vmatpush1.msra.mxu0 %v60
    %1197 = vmatprep.subr.mxu0 0.0
    %1198 = vmatpush1.msra.mxu0 %v61
    %1199 = vmatprep.subr.mxu0 0.0
    %1200 = vmatpush1.msra.mxu0 %v62
    %1201 = vmatprep.subr.mxu0 0.0
    %1202 = vmatpush1.msra.mxu0 0.0
    %1203 = vmatprep.subr.mxu0 0.0
    %1204 = vmatpush1.msra.mxu0 0.0
    %1205 = vmatprep.subr.mxu0 0.0
    %1206 = vmatpush1.msra.mxu0 0.0
    %1207 = vmatprep.subr.mxu0 0.0
    %1208 = vmatpush1.msra.mxu0 0.0
    %1209 = vmatprep.subr.mxu0 0.0
    %1210 = vmatpush1.msra.mxu0 0.0
    %1211 = vmatprep.subr.mxu0 0.0
    %1212 = vmatpush1.msra.mxu0 0.0
    %1213 = vmatprep.subr.mxu0 0.0
    %1214 = vmatpush1.msra.mxu0 0.0
    %1215 = vmatprep.subr.mxu0 0.0
    %1216 = vmatpush1.msra.mxu0 0.0
    %1217 = vmatprep.subr.mxu0 0.0
    %1218 = vmatpush1.msra.mxu0 0.0
    %1219 = vmatprep.subr.mxu0 0.0
    %1220 = vmatpush1.msra.mxu0 0.0
    %1221 = vmatprep.subr.mxu0 0.0
    %1222 = vmatpush1.msra.mxu0 0.0
    %1223 = vmatprep.subr.mxu0 0.0
    %1224 = vmatpush1.msra.mxu0 0.0
    %1225 = vmatprep.subr.mxu0 0.0
    %1226 = vmatpush1.msra.mxu0 0.0
    %1227 = vmatprep.subr.mxu0 0.0
    %1228 = vmatpush1.msra.mxu0 0.0
    %1229 = vmatprep.subr.mxu0 0.0
    %1230 = vmatpush1.msra.mxu0 0.0
    %1231 = vmatprep.subr.mxu0 0.0
    %1232 = vmatpush1.msra.mxu0 0.0
    %1233 = vmatprep.subr.mxu0 0.0
    %1234 = vmatpush1.msra.mxu0 0.0
    %1235 = vmatprep.subr.mxu0 0.0
    %1236 = vmatpush1.msra.mxu0 0.0
    %1237 = vmatprep.subr.mxu0 0.0
    %1238 = vmatpush1.msra.mxu0 0.0
    %1239 = vmatprep.subr.mxu0 0.0
    %1240 = vmatpush1.msra.mxu0 0.0
    %1241 = vmatprep.subr.mxu0 0.0
    %1242 = vmatpush1.msra.mxu0 0.0
    %1243 = vmatprep.subr.mxu0 0.0
    %1244 = vmatpush1.msra.mxu0 0.0
    %1245 = vmatprep.subr.mxu0 0.0
    %1246 = vmatpush1.msra.mxu0 0.0
    %1247 = vmatprep.subr.mxu0 0.0
    %1248 = vmatpush1.msra.mxu0 0.0
    %1249 = vmatprep.subr.mxu0 0.0
    %1250 = vmatpush1.msra.mxu0 0.0
    %1251 = vmatprep.subr.mxu0 0.0
    %1252 = vmatpush1.msra.mxu0 0.0
    %1253 = vmatprep.subr.mxu0 0.0
    %1254 = vmatpush1.msra.mxu0 0.0
    %1255 = vmatprep.subr.mxu0 0.0
    %1256 = vmatpush1.msra.mxu0 0.0
    %1257 = vmatprep.mubr.f32.mxu0 0.0
    %1258 = vmatmul.mubr.f32.gmra.mrb[0].mxu0 %v1051
    %v1259 = vpop.f32.mrb[0].mxu0
    %v1260 = vadd.f32 %v232, %v1259
    %v1261 = vpop.f32.mrb[0].mxu0
    %1262 = vdwg.mxu0
    %v1263 = vadd.f32 %v1047, %v1120
    %v1264 = vxor.u32 %v1263, 2147483648
    %v1265 = vmul.f32 %v1264, 1.442695
    %v1266 = vpow.pop %v1265
    %v1267 = vadd.f32 %v1266, 1.0
    %v1268 = vrcp.pop %v1267
    %v1269 = vmul.f32 1.0, %v1268
    %v1270 = vadd.f32 %v1048, %v1190
    %v1271 = vxor.u32 %v1270, 2147483648
    %v1272 = vmul.f32 %v1271, 1.442695
    %v1273 = vpow.pop %v1272
    %v1274 = vadd.f32 %v1273, 1.0
    %v1275 = vrcp.pop %v1274
    %v1276 = vmul.f32 1.0, %v1275
    %v1277 = vmul.f32 %v1269, %v1260
    %v1278 = vadd.f32 %v1049, %v1277
    %v1279 = vtanh.pop %v1278
    %v1280 = vsub.f32 1.0, %v1276
    %v1281 = vmul.f32 %v1280, %v1279
    %v1282 = vmul.f32 %v1276, %v1043
    %v1283 = vadd.f32 %v1281, %v1282
    %s1284 = scalar_lea.vmem [#allocation8], 32
    %1285 = vst.msk [vmem:[%s1284] sm:$0xff] %vm78, %v1283
    %s1286 = scalar_lea.vmem [#allocation3], 120
    %v1287 = vld [vmem:[%s1286] sm:$0xff]
    %v1288 = vld [vmem:[%s1286 + $0x8] sm:$0xff]
    %v1289 = vld [vmem:[%s1286 + $0x10] sm:$0xff]
    %v1291 = vsel %vm78, %v1283, 0
    %1293 = vmatprep.subr.mxu0 0.0
    %1294 = vmatpush1.msra.mxu0 %v49
    %1295 = vmatprep.subr.mxu0 0.0
    %1296 = vmatpush1.msra.mxu0 %v50
    %1297 = vmatprep.subr.mxu0 0.0
    %1298 = vmatpush1.msra.mxu0 %v51
    %1299 = vmatprep.subr.mxu0 0.0
    %1300 = vmatpush1.msra.mxu0 %v52
    %1301 = vmatprep.subr.mxu0 0.0
    %1302 = vmatpush1.msra.mxu0 0.0
    %1303 = vmatprep.subr.mxu0 0.0
    %1304 = vmatpush1.msra.mxu0 0.0
    %1305 = vmatprep.subr.mxu0 0.0
    %1306 = vmatpush1.msra.mxu0 0.0
    %1307 = vmatprep.subr.mxu0 0.0
    %1308 = vmatpush1.msra.mxu0 0.0
    %1309 = vmatprep.subr.mxu0 0.0
    %1310 = vmatpush1.msra.mxu0 0.0
    %1311 = vmatprep.subr.mxu0 0.0
    %1312 = vmatpush1.msra.mxu0 0.0
    %1313 = vmatprep.subr.mxu0 0.0
    %1314 = vmatpush1.msra.mxu0 0.0
    %1315 = vmatprep.subr.mxu0 0.0
    %1316 = vmatpush1.msra.mxu0 0.0
    %1317 = vmatprep.subr.mxu0 0.0
    %1318 = vmatpush1.msra.mxu0 0.0
    %1319 = vmatprep.subr.mxu0 0.0
    %1320 = vmatpush1.msra.mxu0 0.0
    %1321 = vmatprep.subr.mxu0 0.0
    %1322 = vmatpush1.msra.mxu0 0.0
    %1323 = vmatprep.subr.mxu0 0.0
    %1324 = vmatpush1.msra.mxu0 0.0
    %1325 = vmatprep.subr.mxu0 0.0
    %1326 = vmatpush1.msra.mxu0 0.0
    %1327 = vmatprep.subr.mxu0 0.0
    %1328 = vmatpush1.msra.mxu0 0.0
    %1329 = vmatprep.subr.mxu0 0.0
    %1330 = vmatpush1.msra.mxu0 0.0
    %1331 = vmatprep.subr.mxu0 0.0
    %1332 = vmatpush1.msra.mxu0 0.0
    %1333 = vmatprep.subr.mxu0 0.0
    %1334 = vmatpush1.msra.mxu0 0.0
    %1335 = vmatprep.subr.mxu0 0.0
    %1336 = vmatpush1.msra.mxu0 0.0
    %1337 = vmatprep.subr.mxu0 0.0
    %1338 = vmatpush1.msra.mxu0 0.0
    %1339 = vmatprep.subr.mxu0 0.0
    %1340 = vmatpush1.msra.mxu0 0.0
    %1341 = vmatprep.subr.mxu0 0.0
    %1342 = vmatpush1.msra.mxu0 0.0
    %1343 = vmatprep.subr.mxu0 0.0
    %1344 = vmatpush1.msra.mxu0 0.0
    %1345 = vmatprep.subr.mxu0 0.0
    %1346 = vmatpush1.msra.mxu0 0.0
    %1347 = vmatprep.subr.mxu0 0.0
    %1348 = vmatpush1.msra.mxu0 0.0
    %1349 = vmatprep.subr.mxu0 0.0
    %1350 = vmatpush1.msra.mxu0 0.0
    %1351 = vmatprep.subr.mxu0 0.0
    %1352 = vmatpush1.msra.mxu0 0.0
    %1353 = vmatprep.subr.mxu0 0.0
    %1354 = vmatpush1.msra.mxu0 0.0
    %1355 = vmatprep.subr.mxu0 0.0
    %1356 = vmatpush1.msra.mxu0 0.0
    %1357 = vmatprep.mubr.f32.mxu0 0.0
    %1358 = vmatmul.mubr.f32.gmra.mrb[0].mxu0 %v1291
    %v1359 = vpop.f32.mrb[0].mxu0
    %v1360 = vadd.f32 %v76, %v1359
    %v1361 = vpop.f32.mrb[0].mxu0
    %1362 = vdwg.mxu0
    %1363 = vmatprep.subr.mxu0 0.0
    %1364 = vmatpush1.msra.mxu0 %v54
    %1365 = vmatprep.subr.mxu0 0.0
    %1366 = vmatpush1.msra.mxu0 %v55
    %1367 = vmatprep.subr.mxu0 0.0
    %1368 = vmatpush1.msra.mxu0 %v56
    %1369 = vmatprep.subr.mxu0 0.0
    %1370 = vmatpush1.msra.mxu0 %v57
    %1371 = vmatprep.subr.mxu0 0.0
    %1372 = vmatpush1.msra.mxu0 0.0
    %1373 = vmatprep.subr.mxu0 0.0
    %1374 = vmatpush1.msra.mxu0 0.0
    %1375 = vmatprep.subr.mxu0 0.0
    %1376 = vmatpush1.msra.mxu0 0.0
    %1377 = vmatprep.subr.mxu0 0.0
    %1378 = vmatpush1.msra.mxu0 0.0
    %1379 = vmatprep.subr.mxu0 0.0
    %1380 = vmatpush1.msra.mxu0 0.0
    %1381 = vmatprep.subr.mxu0 0.0
    %1382 = vmatpush1.msra.mxu0 0.0
    %1383 = vmatprep.subr.mxu0 0.0
    %1384 = vmatpush1.msra.mxu0 0.0
    %1385 = vmatprep.subr.mxu0 0.0
    %1386 = vmatpush1.msra.mxu0 0.0
    %1387 = vmatprep.subr.mxu0 0.0
    %1388 = vmatpush1.msra.mxu0 0.0
    %1389 = vmatprep.subr.mxu0 0.0
    %1390 = vmatpush1.msra.mxu0 0.0
    %1391 = vmatprep.subr.mxu0 0.0
    %1392 = vmatpush1.msra.mxu0 0.0
    %1393 = vmatprep.subr.mxu0 0.0
    %1394 = vmatpush1.msra.mxu0 0.0
    %1395 = vmatprep.subr.mxu0 0.0
    %1396 = vmatpush1.msra.mxu0 0.0
    %1397 = vmatprep.subr.mxu0 0.0
    %1398 = vmatpush1.msra.mxu0 0.0
    %1399 = vmatprep.subr.mxu0 0.0
    %1400 = vmatpush1.msra.mxu0 0.0
    %1401 = vmatprep.subr.mxu0 0.0
    %1402 = vmatpush1.msra.mxu0 0.0
    %1403 = vmatprep.subr.mxu0 0.0
    %1404 = vmatpush1.msra.mxu0 0.0
    %1405 = vmatprep.subr.mxu0 0.0
    %1406 = vmatpush1.msra.mxu0 0.0
    %1407 = vmatprep.subr.mxu0 0.0
    %1408 = vmatpush1.msra.mxu0 0.0
    %1409 = vmatprep.subr.mxu0 0.0
    %1410 = vmatpush1.msra.mxu0 0.0
    %1411 = vmatprep.subr.mxu0 0.0
    %1412 = vmatpush1.msra.mxu0 0.0
    %1413 = vmatprep.subr.mxu0 0.0
    %1414 = vmatpush1.msra.mxu0 0.0
    %1415 = vmatprep.subr.mxu0 0.0
    %1416 = vmatpush1.msra.mxu0 0.0
    %1417 = vmatprep.subr.mxu0 0.0
    %1418 = vmatpush1.msra.mxu0 0.0
    %1419 = vmatprep.subr.mxu0 0.0
    %1420 = vmatpush1.msra.mxu0 0.0
    %1421 = vmatprep.subr.mxu0 0.0
    %1422 = vmatpush1.msra.mxu0 0.0
    %1423 = vmatprep.subr.mxu0 0.0
    %1424 = vmatpush1.msra.mxu0 0.0
    %1425 = vmatprep.subr.mxu0 0.0
    %1426 = vmatpush1.msra.mxu0 0.0
    %1427 = vmatprep.mubr.f32.mxu0 0.0
    %1428 = vmatmul.mubr.f32.gmra.mrb[0].mxu0 %v1291
    %v1429 = vpop.f32.mrb[0].mxu0
    %v1430 = vadd.f32 %v156, %v1429
    %v1431 = vpop.f32.mrb[0].mxu0
    %1432 = vdwg.mxu0
    %1433 = vmatprep.subr.mxu0 0.0
    %1434 = vmatpush1.msra.mxu0 %v59
    %1435 = vmatprep.subr.mxu0 0.0
    %1436 = vmatpush1.msra.mxu0 %v60
    %1437 = vmatprep.subr.mxu0 0.0
    %1438 = vmatpush1.msra.mxu0 %v61
    %1439 = vmatprep.subr.mxu0 0.0
    %1440 = vmatpush1.msra.mxu0 %v62
    %1441 = vmatprep.subr.mxu0 0.0
    %1442 = vmatpush1.msra.mxu0 0.0
    %1443 = vmatprep.subr.mxu0 0.0
    %1444 = vmatpush1.msra.mxu0 0.0
    %1445 = vmatprep.subr.mxu0 0.0
    %1446 = vmatpush1.msra.mxu0 0.0
    %1447 = vmatprep.subr.mxu0 0.0
    %1448 = vmatpush1.msra.mxu0 0.0
    %1449 = vmatprep.subr.mxu0 0.0
    %1450 = vmatpush1.msra.mxu0 0.0
    %1451 = vmatprep.subr.mxu0 0.0
    %1452 = vmatpush1.msra.mxu0 0.0
    %1453 = vmatprep.subr.mxu0 0.0
    %1454 = vmatpush1.msra.mxu0 0.0
    %1455 = vmatprep.subr.mxu0 0.0
    %1456 = vmatpush1.msra.mxu0 0.0
    %1457 = vmatprep.subr.mxu0 0.0
    %1458 = vmatpush1.msra.mxu0 0.0
    %1459 = vmatprep.subr.mxu0 0.0
    %1460 = vmatpush1.msra.mxu0 0.0
    %1461 = vmatprep.subr.mxu0 0.0
    %1462 = vmatpush1.msra.mxu0 0.0
    %1463 = vmatprep.subr.mxu0 0.0
    %1464 = vmatpush1.msra.mxu0 0.0
    %1465 = vmatprep.subr.mxu0 0.0
    %1466 = vmatpush1.msra.mxu0 0.0
    %1467 = vmatprep.subr.mxu0 0.0
    %1468 = vmatpush1.msra.mxu0 0.0
    %1469 = vmatprep.subr.mxu0 0.0
    %1470 = vmatpush1.msra.mxu0 0.0
    %1471 = vmatprep.subr.mxu0 0.0
    %1472 = vmatpush1.msra.mxu0 0.0
    %1473 = vmatprep.subr.mxu0 0.0
    %1474 = vmatpush1.msra.mxu0 0.0
    %1475 = vmatprep.subr.mxu0 0.0
    %1476 = vmatpush1.msra.mxu0 0.0
    %1477 = vmatprep.subr.mxu0 0.0
    %1478 = vmatpush1.msra.mxu0 0.0
    %1479 = vmatprep.subr.mxu0 0.0
    %1480 = vmatpush1.msra.mxu0 0.0
    %1481 = vmatprep.subr.mxu0 0.0
    %1482 = vmatpush1.msra.mxu0 0.0
    %1483 = vmatprep.subr.mxu0 0.0
    %1484 = vmatpush1.msra.mxu0 0.0
    %1485 = vmatprep.subr.mxu0 0.0
    %1486 = vmatpush1.msra.mxu0 0.0
    %1487 = vmatprep.subr.mxu0 0.0
    %1488 = vmatpush1.msra.mxu0 0.0
    %1489 = vmatprep.subr.mxu0 0.0
    %1490 = vmatpush1.msra.mxu0 0.0
    %1491 = vmatprep.subr.mxu0 0.0
    %1492 = vmatpush1.msra.mxu0 0.0
    %1493 = vmatprep.subr.mxu0 0.0
    %1494 = vmatpush1.msra.mxu0 0.0
    %1495 = vmatprep.subr.mxu0 0.0
    %1496 = vmatpush1.msra.mxu0 0.0
    %1497 = vmatprep.mubr.f32.mxu0 0.0
    %1498 = vmatmul.mubr.f32.gmra.mrb[0].mxu0 %v1291
    %v1499 = vpop.f32.mrb[0].mxu0
    %v1500 = vadd.f32 %v232, %v1499
    %v1501 = vpop.f32.mrb[0].mxu0
    %1502 = vdwg.mxu0
    %v1503 = vadd.f32 %v1287, %v1360
    %v1504 = vxor.u32 %v1503, 2147483648
    %v1505 = vmul.f32 %v1504, 1.442695
    %v1506 = vpow.pop %v1505
    %v1507 = vadd.f32 %v1506, 1.0
    %v1508 = vrcp.pop %v1507
    %v1509 = vmul.f32 1.0, %v1508
    %v1510 = vadd.f32 %v1288, %v1430
    %v1511 = vxor.u32 %v1510, 2147483648
    %v1512 = vmul.f32 %v1511, 1.442695
    %v1513 = vpow.pop %v1512
    %v1514 = vadd.f32 %v1513, 1.0
    %v1515 = vrcp.pop %v1514
    %v1516 = vmul.f32 1.0, %v1515
    %v1517 = vmul.f32 %v1509, %v1500
    %v1518 = vadd.f32 %v1289, %v1517
    %v1519 = vtanh.pop %v1518
    %v1520 = vsub.f32 1.0, %v1516
    %v1521 = vmul.f32 %v1520, %v1519
    %v1522 = vmul.f32 %v1516, %v1283
    %v1523 = vadd.f32 %v1521, %v1522
    %s1524 = scalar_lea.vmem [#allocation8], 40
    %1525 = vst.msk [vmem:[%s1524] sm:$0xff] %vm78, %v1523
    %s1526 = scalar_lea.vmem [#allocation3], 144
    %v1527 = vld [vmem:[%s1526] sm:$0xff]
    %v1528 = vld [vmem:[%s1526 + $0x8] sm:$0xff]
    %v1529 = vld [vmem:[%s1526 + $0x10] sm:$0xff]
    %v1531 = vsel %vm78, %v1523, 0
    %1533 = vmatprep.subr.mxu0 0.0
    %1534 = vmatpush1.msra.mxu0 %v49
    %1535 = vmatprep.subr.mxu0 0.0
    %1536 = vmatpush1.msra.mxu0 %v50
    %1537 = vmatprep.subr.mxu0 0.0
    %1538 = vmatpush1.msra.mxu0 %v51
    %1539 = vmatprep.subr.mxu0 0.0
    %1540 = vmatpush1.msra.mxu0 %v52
    %1541 = vmatprep.subr.mxu0 0.0
    %1542 = vmatpush1.msra.mxu0 0.0
    %1543 = vmatprep.subr.mxu0 0.0
    %1544 = vmatpush1.msra.mxu0 0.0
    %1545 = vmatprep.subr.mxu0 0.0
    %1546 = vmatpush1.msra.mxu0 0.0
    %1547 = vmatprep.subr.mxu0 0.0
    %1548 = vmatpush1.msra.mxu0 0.0
    %1549 = vmatprep.subr.mxu0 0.0
    %1550 = vmatpush1.msra.mxu0 0.0
    %1551 = vmatprep.subr.mxu0 0.0
    %1552 = vmatpush1.msra.mxu0 0.0
    %1553 = vmatprep.subr.mxu0 0.0
    %1554 = vmatpush1.msra.mxu0 0.0
    %1555 = vmatprep.subr.mxu0 0.0
    %1556 = vmatpush1.msra.mxu0 0.0
    %1557 = vmatprep.subr.mxu0 0.0
    %1558 = vmatpush1.msra.mxu0 0.0
    %1559 = vmatprep.subr.mxu0 0.0
    %1560 = vmatpush1.msra.mxu0 0.0
    %1561 = vmatprep.subr.mxu0 0.0
    %1562 = vmatpush1.msra.mxu0 0.0
    %1563 = vmatprep.subr.mxu0 0.0
    %1564 = vmatpush1.msra.mxu0 0.0
    %1565 = vmatprep.subr.mxu0 0.0
    %1566 = vmatpush1.msra.mxu0 0.0
    %1567 = vmatprep.subr.mxu0 0.0
    %1568 = vmatpush1.msra.mxu0 0.0
    %1569 = vmatprep.subr.mxu0 0.0
    %1570 = vmatpush1.msra.mxu0 0.0
    %1571 = vmatprep.subr.mxu0 0.0
    %1572 = vmatpush1.msra.mxu0 0.0
    %1573 = vmatprep.subr.mxu0 0.0
    %1574 = vmatpush1.msra.mxu0 0.0
    %1575 = vmatprep.subr.mxu0 0.0
    %1576 = vmatpush1.msra.mxu0 0.0
    %1577 = vmatprep.subr.mxu0 0.0
    %1578 = vmatpush1.msra.mxu0 0.0
    %1579 = vmatprep.subr.mxu0 0.0
    %1580 = vmatpush1.msra.mxu0 0.0
    %1581 = vmatprep.subr.mxu0 0.0
    %1582 = vmatpush1.msra.mxu0 0.0
    %1583 = vmatprep.subr.mxu0 0.0
    %1584 = vmatpush1.msra.mxu0 0.0
    %1585 = vmatprep.subr.mxu0 0.0
    %1586 = vmatpush1.msra.mxu0 0.0
    %1587 = vmatprep.subr.mxu0 0.0
    %1588 = vmatpush1.msra.mxu0 0.0
    %1589 = vmatprep.subr.mxu0 0.0
    %1590 = vmatpush1.msra.mxu0 0.0
    %1591 = vmatprep.subr.mxu0 0.0
    %1592 = vmatpush1.msra.mxu0 0.0
    %1593 = vmatprep.subr.mxu0 0.0
    %1594 = vmatpush1.msra.mxu0 0.0
    %1595 = vmatprep.subr.mxu0 0.0
    %1596 = vmatpush1.msra.mxu0 0.0
    %1597 = vmatprep.mubr.f32.mxu0 0.0
    %1598 = vmatmul.mubr.f32.gmra.mrb[0].mxu0 %v1531
    %v1599 = vpop.f32.mrb[0].mxu0
    %v1600 = vadd.f32 %v76, %v1599
    %v1601 = vpop.f32.mrb[0].mxu0
    %1602 = vdwg.mxu0
    %1603 = vmatprep.subr.mxu0 0.0
    %1604 = vmatpush1.msra.mxu0 %v54
    %1605 = vmatprep.subr.mxu0 0.0
    %1606 = vmatpush1.msra.mxu0 %v55
    %1607 = vmatprep.subr.mxu0 0.0
    %1608 = vmatpush1.msra.mxu0 %v56
    %1609 = vmatprep.subr.mxu0 0.0
    %1610 = vmatpush1.msra.mxu0 %v57
    %1611 = vmatprep.subr.mxu0 0.0
    %1612 = vmatpush1.msra.mxu0 0.0
    %1613 = vmatprep.subr.mxu0 0.0
    %1614 = vmatpush1.msra.mxu0 0.0
    %1615 = vmatprep.subr.mxu0 0.0
    %1616 = vmatpush1.msra.mxu0 0.0
    %1617 = vmatprep.subr.mxu0 0.0
    %1618 = vmatpush1.msra.mxu0 0.0
    %1619 = vmatprep.subr.mxu0 0.0
    %1620 = vmatpush1.msra.mxu0 0.0
    %1621 = vmatprep.subr.mxu0 0.0
    %1622 = vmatpush1.msra.mxu0 0.0
    %1623 = vmatprep.subr.mxu0 0.0
    %1624 = vmatpush1.msra.mxu0 0.0
    %1625 = vmatprep.subr.mxu0 0.0
    %1626 = vmatpush1.msra.mxu0 0.0
    %1627 = vmatprep.subr.mxu0 0.0
    %1628 = vmatpush1.msra.mxu0 0.0
    %1629 = vmatprep.subr.mxu0 0.0
    %1630 = vmatpush1.msra.mxu0 0.0
    %1631 = vmatprep.subr.mxu0 0.0
    %1632 = vmatpush1.msra.mxu0 0.0
    %1633 = vmatprep.subr.mxu0 0.0
    %1634 = vmatpush1.msra.mxu0 0.0
    %1635 = vmatprep.subr.mxu0 0.0
    %1636 = vmatpush1.msra.mxu0 0.0
    %1637 = vmatprep.subr.mxu0 0.0
    %1638 = vmatpush1.msra.mxu0 0.0
    %1639 = vmatprep.subr.mxu0 0.0
    %1640 = vmatpush1.msra.mxu0 0.0
    %1641 = vmatprep.subr.mxu0 0.0
    %1642 = vmatpush1.msra.mxu0 0.0
    %1643 = vmatprep.subr.mxu0 0.0
    %1644 = vmatpush1.msra.mxu0 0.0
    %1645 = vmatprep.subr.mxu0 0.0
    %1646 = vmatpush1.msra.mxu0 0.0
    %1647 = vmatprep.subr.mxu0 0.0
    %1648 = vmatpush1.msra.mxu0 0.0
    %1649 = vmatprep.subr.mxu0 0.0
    %1650 = vmatpush1.msra.mxu0 0.0
    %1651 = vmatprep.subr.mxu0 0.0
    %1652 = vmatpush1.msra.mxu0 0.0
    %1653 = vmatprep.subr.mxu0 0.0
    %1654 = vmatpush1.msra.mxu0 0.0
    %1655 = vmatprep.subr.mxu0 0.0
    %1656 = vmatpush1.msra.mxu0 0.0
    %1657 = vmatprep.subr.mxu0 0.0
    %1658 = vmatpush1.msra.mxu0 0.0
    %1659 = vmatprep.subr.mxu0 0.0
    %1660 = vmatpush1.msra.mxu0 0.0
    %1661 = vmatprep.subr.mxu0 0.0
    %1662 = vmatpush1.msra.mxu0 0.0
    %1663 = vmatprep.subr.mxu0 0.0
    %1664 = vmatpush1.msra.mxu0 0.0
    %1665 = vmatprep.subr.mxu0 0.0
    %1666 = vmatpush1.msra.mxu0 0.0
    %1667 = vmatprep.mubr.f32.mxu0 0.0
    %1668 = vmatmul.mubr.f32.gmra.mrb[0].mxu0 %v1531
    %v1669 = vpop.f32.mrb[0].mxu0
    %v1670 = vadd.f32 %v156, %v1669
    %v1671 = vpop.f32.mrb[0].mxu0
    %1672 = vdwg.mxu0
    %1673 = vmatprep.subr.mxu0 0.0
    %1674 = vmatpush1.msra.mxu0 %v59
    %1675 = vmatprep.subr.mxu0 0.0
    %1676 = vmatpush1.msra.mxu0 %v60
    %1677 = vmatprep.subr.mxu0 0.0
    %1678 = vmatpush1.msra.mxu0 %v61
    %1679 = vmatprep.subr.mxu0 0.0
    %1680 = vmatpush1.msra.mxu0 %v62
    %1681 = vmatprep.subr.mxu0 0.0
    %1682 = vmatpush1.msra.mxu0 0.0
    %1683 = vmatprep.subr.mxu0 0.0
    %1684 = vmatpush1.msra.mxu0 0.0
    %1685 = vmatprep.subr.mxu0 0.0
    %1686 = vmatpush1.msra.mxu0 0.0
    %1687 = vmatprep.subr.mxu0 0.0
    %1688 = vmatpush1.msra.mxu0 0.0
    %1689 = vmatprep.subr.mxu0 0.0
    %1690 = vmatpush1.msra.mxu0 0.0
    %1691 = vmatprep.subr.mxu0 0.0
    %1692 = vmatpush1.msra.mxu0 0.0
    %1693 = vmatprep.subr.mxu0 0.0
    %1694 = vmatpush1.msra.mxu0 0.0
    %1695 = vmatprep.subr.mxu0 0.0
    %1696 = vmatpush1.msra.mxu0 0.0
    %1697 = vmatprep.subr.mxu0 0.0
    %1698 = vmatpush1.msra.mxu0 0.0
    %1699 = vmatprep.subr.mxu0 0.0
    %1700 = vmatpush1.msra.mxu0 0.0
    %1701 = vmatprep.subr.mxu0 0.0
    %1702 = vmatpush1.msra.mxu0 0.0
    %1703 = vmatprep.subr.mxu0 0.0
    %1704 = vmatpush1.msra.mxu0 0.0
    %1705 = vmatprep.subr.mxu0 0.0
    %1706 = vmatpush1.msra.mxu0 0.0
    %1707 = vmatprep.subr.mxu0 0.0
    %1708 = vmatpush1.msra.mxu0 0.0
    %1709 = vmatprep.subr.mxu0 0.0
    %1710 = vmatpush1.msra.mxu0 0.0
    %1711 = vmatprep.subr.mxu0 0.0
    %1712 = vmatpush1.msra.mxu0 0.0
    %1713 = vmatprep.subr.mxu0 0.0
    %1714 = vmatpush1.msra.mxu0 0.0
    %1715 = vmatprep.subr.mxu0 0.0
    %1716 = vmatpush1.msra.mxu0 0.0
    %1717 = vmatprep.subr.mxu0 0.0
    %1718 = vmatpush1.msra.mxu0 0.0
    %1719 = vmatprep.subr.mxu0 0.0
    %1720 = vmatpush1.msra.mxu0 0.0
    %1721 = vmatprep.subr.mxu0 0.0
    %1722 = vmatpush1.msra.mxu0 0.0
    %1723 = vmatprep.subr.mxu0 0.0
    %1724 = vmatpush1.msra.mxu0 0.0
    %1725 = vmatprep.subr.mxu0 0.0
    %1726 = vmatpush1.msra.mxu0 0.0
    %1727 = vmatprep.subr.mxu0 0.0
    %1728 = vmatpush1.msra.mxu0 0.0
    %1729 = vmatprep.subr.mxu0 0.0
    %1730 = vmatpush1.msra.mxu0 0.0
    %1731 = vmatprep.subr.mxu0 0.0
    %1732 = vmatpush1.msra.mxu0 0.0
    %1733 = vmatprep.subr.mxu0 0.0
    %1734 = vmatpush1.msra.mxu0 0.0
    %1735 = vmatprep.subr.mxu0 0.0
    %1736 = vmatpush1.msra.mxu0 0.0
    %1737 = vmatprep.mubr.f32.mxu0 0.0
    %1738 = vmatmul.mubr.f32.gmra.mrb[0].mxu0 %v1531
    %v1739 = vpop.f32.mrb[0].mxu0
    %v1740 = vadd.f32 %v232, %v1739
    %v1741 = vpop.f32.mrb[0].mxu0
    %1742 = vdwg.mxu0
    %v1743 = vadd.f32 %v1527, %v1600
    %v1744 = vxor.u32 %v1743, 2147483648
    %v1745 = vmul.f32 %v1744, 1.442695
    %v1746 = vpow.pop %v1745
    %v1747 = vadd.f32 %v1746, 1.0
    %v1748 = vrcp.pop %v1747
    %v1749 = vmul.f32 1.0, %v1748
    %v1750 = vadd.f32 %v1528, %v1670
    %v1751 = vxor.u32 %v1750, 2147483648
    %v1752 = vmul.f32 %v1751, 1.442695
    %v1753 = vpow.pop %v1752
    %v1754 = vadd.f32 %v1753, 1.0
    %v1755 = vrcp.pop %v1754
    %v1756 = vmul.f32 1.0, %v1755
    %v1757 = vmul.f32 %v1749, %v1740
    %v1758 = vadd.f32 %v1529, %v1757
    %v1759 = vtanh.pop %v1758
    %v1760 = vsub.f32 1.0, %v1756
    %v1761 = vmul.f32 %v1760, %v1759
    %v1762 = vmul.f32 %v1756, %v1523
    %v1763 = vadd.f32 %v1761, %v1762
    %s1764 = scalar_lea.vmem [#allocation8], 48
    %1765 = vst.msk [vmem:[%s1764] sm:$0xff] %vm78, %v1763
    %s1766 = scalar_lea.vmem [#allocation3], 168
    %v1767 = vld [vmem:[%s1766] sm:$0xff]
    %v1768 = vld [vmem:[%s1766 + $0x8] sm:$0xff]
    %v1769 = vld [vmem:[%s1766 + $0x10] sm:$0xff]
    %v1771 = vsel %vm78, %v1763, 0
    %1773 = vmatprep.subr.mxu0 0.0
    %1774 = vmatpush1.msra.mxu0 %v49
    %1775 = vmatprep.subr.mxu0 0.0
    %1776 = vmatpush1.msra.mxu0 %v50
    %1777 = vmatprep.subr.mxu0 0.0
    %1778 = vmatpush1.msra.mxu0 %v51
    %1779 = vmatprep.subr.mxu0 0.0
    %1780 = vmatpush1.msra.mxu0 %v52
    %1781 = vmatprep.subr.mxu0 0.0
    %1782 = vmatpush1.msra.mxu0 0.0
    %1783 = vmatprep.subr.mxu0 0.0
    %1784 = vmatpush1.msra.mxu0 0.0
    %1785 = vmatprep.subr.mxu0 0.0
    %1786 = vmatpush1.msra.mxu0 0.0
    %1787 = vmatprep.subr.mxu0 0.0
    %1788 = vmatpush1.msra.mxu0 0.0
    %1789 = vmatprep.subr.mxu0 0.0
    %1790 = vmatpush1.msra.mxu0 0.0
    %1791 = vmatprep.subr.mxu0 0.0
    %1792 = vmatpush1.msra.mxu0 0.0
    %1793 = vmatprep.subr.mxu0 0.0
    %1794 = vmatpush1.msra.mxu0 0.0
    %1795 = vmatprep.subr.mxu0 0.0
    %1796 = vmatpush1.msra.mxu0 0.0
    %1797 = vmatprep.subr.mxu0 0.0
    %1798 = vmatpush1.msra.mxu0 0.0
    %1799 = vmatprep.subr.mxu0 0.0
    %1800 = vmatpush1.msra.mxu0 0.0
    %1801 = vmatprep.subr.mxu0 0.0
    %1802 = vmatpush1.msra.mxu0 0.0
    %1803 = vmatprep.subr.mxu0 0.0
    %1804 = vmatpush1.msra.mxu0 0.0
    %1805 = vmatprep.subr.mxu0 0.0
    %1806 = vmatpush1.msra.mxu0 0.0
    %1807 = vmatprep.subr.mxu0 0.0
    %1808 = vmatpush1.msra.mxu0 0.0
    %1809 = vmatprep.subr.mxu0 0.0
    %1810 = vmatpush1.msra.mxu0 0.0
    %1811 = vmatprep.subr.mxu0 0.0
    %1812 = vmatpush1.msra.mxu0 0.0
    %1813 = vmatprep.subr.mxu0 0.0
    %1814 = vmatpush1.msra.mxu0 0.0
    %1815 = vmatprep.subr.mxu0 0.0
    %1816 = vmatpush1.msra.mxu0 0.0
    %1817 = vmatprep.subr.mxu0 0.0
    %1818 = vmatpush1.msra.mxu0 0.0
    %1819 = vmatprep.subr.mxu0 0.0
    %1820 = vmatpush1.msra.mxu0 0.0
    %1821 = vmatprep.subr.mxu0 0.0
    %1822 = vmatpush1.msra.mxu0 0.0
    %1823 = vmatprep.subr.mxu0 0.0
    %1824 = vmatpush1.msra.mxu0 0.0
    %1825 = vmatprep.subr.mxu0 0.0
    %1826 = vmatpush1.msra.mxu0 0.0
    %1827 = vmatprep.subr.mxu0 0.0
    %1828 = vmatpush1.msra.mxu0 0.0
    %1829 = vmatprep.subr.mxu0 0.0
    %1830 = vmatpush1.msra.mxu0 0.0
    %1831 = vmatprep.subr.mxu0 0.0
    %1832 = vmatpush1.msra.mxu0 0.0
    %1833 = vmatprep.subr.mxu0 0.0
    %1834 = vmatpush1.msra.mxu0 0.0
    %1835 = vmatprep.subr.mxu0 0.0
    %1836 = vmatpush1.msra.mxu0 0.0
    %1837 = vmatprep.mubr.f32.mxu0 0.0
    %1838 = vmatmul.mubr.f32.gmra.mrb[0].mxu0 %v1771
    %v1839 = vpop.f32.mrb[0].mxu0
    %v1840 = vadd.f32 %v76, %v1839
    %v1841 = vpop.f32.mrb[0].mxu0
    %1842 = vdwg.mxu0
    %1843 = vmatprep.subr.mxu0 0.0
    %1844 = vmatpush1.msra.mxu0 %v54
    %1845 = vmatprep.subr.mxu0 0.0
    %1846 = vmatpush1.msra.mxu0 %v55
    %1847 = vmatprep.subr.mxu0 0.0
    %1848 = vmatpush1.msra.mxu0 %v56
    %1849 = vmatprep.subr.mxu0 0.0
    %1850 = vmatpush1.msra.mxu0 %v57
    %1851 = vmatprep.subr.mxu0 0.0
    %1852 = vmatpush1.msra.mxu0 0.0
    %1853 = vmatprep.subr.mxu0 0.0
    %1854 = vmatpush1.msra.mxu0 0.0
    %1855 = vmatprep.subr.mxu0 0.0
    %1856 = vmatpush1.msra.mxu0 0.0
    %1857 = vmatprep.subr.mxu0 0.0
    %1858 = vmatpush1.msra.mxu0 0.0
    %1859 = vmatprep.subr.mxu0 0.0
    %1860 = vmatpush1.msra.mxu0 0.0
    %1861 = vmatprep.subr.mxu0 0.0
    %1862 = vmatpush1.msra.mxu0 0.0
    %1863 = vmatprep.subr.mxu0 0.0
    %1864 = vmatpush1.msra.mxu0 0.0
    %1865 = vmatprep.subr.mxu0 0.0
    %1866 = vmatpush1.msra.mxu0 0.0
    %1867 = vmatprep.subr.mxu0 0.0
    %1868 = vmatpush1.msra.mxu0 0.0
    %1869 = vmatprep.subr.mxu0 0.0
    %1870 = vmatpush1.msra.mxu0 0.0
    %1871 = vmatprep.subr.mxu0 0.0
    %1872 = vmatpush1.msra.mxu0 0.0
    %1873 = vmatprep.subr.mxu0 0.0
    %1874 = vmatpush1.msra.mxu0 0.0
    %1875 = vmatprep.subr.mxu0 0.0
    %1876 = vmatpush1.msra.mxu0 0.0
    %1877 = vmatprep.subr.mxu0 0.0
    %1878 = vmatpush1.msra.mxu0 0.0
    %1879 = vmatprep.subr.mxu0 0.0
    %1880 = vmatpush1.msra.mxu0 0.0
    %1881 = vmatprep.subr.mxu0 0.0
    %1882 = vmatpush1.msra.mxu0 0.0
    %1883 = vmatprep.subr.mxu0 0.0
    %1884 = vmatpush1.msra.mxu0 0.0
    %1885 = vmatprep.subr.mxu0 0.0
    %1886 = vmatpush1.msra.mxu0 0.0
    %1887 = vmatprep.subr.mxu0 0.0
    %1888 = vmatpush1.msra.mxu0 0.0
    %1889 = vmatprep.subr.mxu0 0.0
    %1890 = vmatpush1.msra.mxu0 0.0
    %1891 = vmatprep.subr.mxu0 0.0
    %1892 = vmatpush1.msra.mxu0 0.0
    %1893 = vmatprep.subr.mxu0 0.0
    %1894 = vmatpush1.msra.mxu0 0.0
    %1895 = vmatprep.subr.mxu0 0.0
    %1896 = vmatpush1.msra.mxu0 0.0
    %1897 = vmatprep.subr.mxu0 0.0
    %1898 = vmatpush1.msra.mxu0 0.0
    %1899 = vmatprep.subr.mxu0 0.0
    %1900 = vmatpush1.msra.mxu0 0.0
    %1901 = vmatprep.subr.mxu0 0.0
    %1902 = vmatpush1.msra.mxu0 0.0
    %1903 = vmatprep.subr.mxu0 0.0
    %1904 = vmatpush1.msra.mxu0 0.0
    %1905 = vmatprep.subr.mxu0 0.0
    %1906 = vmatpush1.msra.mxu0 0.0
    %1907 = vmatprep.mubr.f32.mxu0 0.0
    %1908 = vmatmul.mubr.f32.gmra.mrb[0].mxu0 %v1771
    %v1909 = vpop.f32.mrb[0].mxu0
    %v1910 = vadd.f32 %v156, %v1909
    %v1911 = vpop.f32.mrb[0].mxu0
    %1912 = vdwg.mxu0
    %1913 = vmatprep.subr.mxu0 0.0
    %1914 = vmatpush1.msra.mxu0 %v59
    %1915 = vmatprep.subr.mxu0 0.0
    %1916 = vmatpush1.msra.mxu0 %v60
    %1917 = vmatprep.subr.mxu0 0.0
    %1918 = vmatpush1.msra.mxu0 %v61
    %1919 = vmatprep.subr.mxu0 0.0
    %1920 = vmatpush1.msra.mxu0 %v62
    %1921 = vmatprep.subr.mxu0 0.0
    %1922 = vmatpush1.msra.mxu0 0.0
    %1923 = vmatprep.subr.mxu0 0.0
    %1924 = vmatpush1.msra.mxu0 0.0
    %1925 = vmatprep.subr.mxu0 0.0
    %1926 = vmatpush1.msra.mxu0 0.0
    %1927 = vmatprep.subr.mxu0 0.0
    %1928 = vmatpush1.msra.mxu0 0.0
    %1929 = vmatprep.subr.mxu0 0.0
    %1930 = vmatpush1.msra.mxu0 0.0
    %1931 = vmatprep.subr.mxu0 0.0
    %1932 = vmatpush1.msra.mxu0 0.0
    %1933 = vmatprep.subr.mxu0 0.0
    %1934 = vmatpush1.msra.mxu0 0.0
    %1935 = vmatprep.subr.mxu0 0.0
    %1936 = vmatpush1.msra.mxu0 0.0
    %1937 = vmatprep.subr.mxu0 0.0
    %1938 = vmatpush1.msra.mxu0 0.0
    %1939 = vmatprep.subr.mxu0 0.0
    %1940 = vmatpush1.msra.mxu0 0.0
    %1941 = vmatprep.subr.mxu0 0.0
    %1942 = vmatpush1.msra.mxu0 0.0
    %1943 = vmatprep.subr.mxu0 0.0
    %1944 = vmatpush1.msra.mxu0 0.0
    %1945 = vmatprep.subr.mxu0 0.0
    %1946 = vmatpush1.msra.mxu0 0.0
    %1947 = vmatprep.subr.mxu0 0.0
    %1948 = vmatpush1.msra.mxu0 0.0
    %1949 = vmatprep.subr.mxu0 0.0
    %1950 = vmatpush1.msra.mxu0 0.0
    %1951 = vmatprep.subr.mxu0 0.0
    %1952 = vmatpush1.msra.mxu0 0.0
    %1953 = vmatprep.subr.mxu0 0.0
    %1954 = vmatpush1.msra.mxu0 0.0
    %1955 = vmatprep.subr.mxu0 0.0
    %1956 = vmatpush1.msra.mxu0 0.0
    %1957 = vmatprep.subr.mxu0 0.0
    %1958 = vmatpush1.msra.mxu0 0.0
    %1959 = vmatprep.subr.mxu0 0.0
    %1960 = vmatpush1.msra.mxu0 0.0
    %1961 = vmatprep.subr.mxu0 0.0
    %1962 = vmatpush1.msra.mxu0 0.0
    %1963 = vmatprep.subr.mxu0 0.0
    %1964 = vmatpush1.msra.mxu0 0.0
    %1965 = vmatprep.subr.mxu0 0.0
    %1966 = vmatpush1.msra.mxu0 0.0
    %1967 = vmatprep.subr.mxu0 0.0
    %1968 = vmatpush1.msra.mxu0 0.0
    %1969 = vmatprep.subr.mxu0 0.0
    %1970 = vmatpush1.msra.mxu0 0.0
    %1971 = vmatprep.subr.mxu0 0.0
    %1972 = vmatpush1.msra.mxu0 0.0
    %1973 = vmatprep.subr.mxu0 0.0
    %1974 = vmatpush1.msra.mxu0 0.0
    %1975 = vmatprep.subr.mxu0 0.0
    %1976 = vmatpush1.msra.mxu0 0.0
    %1977 = vmatprep.mubr.f32.mxu0 0.0
    %1978 = vmatmul.mubr.f32.gmra.mrb[0].mxu0 %v1771
    %v1979 = vpop.f32.mrb[0].mxu0
    %v1980 = vadd.f32 %v232, %v1979
    %v1981 = vpop.f32.mrb[0].mxu0
    %1982 = vdwg.mxu0
    %v1983 = vadd.f32 %v1767, %v1840
    %v1984 = vxor.u32 %v1983, 2147483648
    %v1985 = vmul.f32 %v1984, 1.442695
    %v1986 = vpow.pop %v1985
    %v1987 = vadd.f32 %v1986, 1.0
    %v1988 = vrcp.pop %v1987
    %v1989 = vmul.f32 1.0, %v1988
    %v1990 = vadd.f32 %v1768, %v1910
    %v1991 = vxor.u32 %v1990, 2147483648
    %v1992 = vmul.f32 %v1991, 1.442695
    %v1993 = vpow.pop %v1992
    %v1994 = vadd.f32 %v1993, 1.0
    %v1995 = vrcp.pop %v1994
    %v1996 = vmul.f32 1.0, %v1995
    %v1997 = vmul.f32 %v1989, %v1980
    %v1998 = vadd.f32 %v1769, %v1997
    %v1999 = vtanh.pop %v1998
    %v2000 = vsub.f32 1.0, %v1996
    %v2001 = vmul.f32 %v2000, %v1999
    %v2002 = vmul.f32 %v1996, %v1763
    %v2003 = vadd.f32 %v2001, %v2002
    %s2004 = scalar_lea.vmem [#allocation8], 56
    %2005 = vst.msk [vmem:[%s2004] sm:$0xff] %vm78, %v2003
    %2006 = vst.msk [vmem:[#allocation2] sm:$0xff] %vm78, %v2003
    // Predicated region
    $region26: #{tpu_custom_call.1} parent=1 // pred_check
      _
    $region27: #{tpu_custom_call.1} parent=1 // pred_check_branch
      %2008 = sbr.rel (0) target = $region29
    $region28: #{tpu_custom_call.1} parent=1 // pred_region
      %s2010 = ssub.s32 1024, 1024
      %2011 = vsyncadd [#allocation5], %s2010
      %s2012 = sshll.u32 [#allocation8], 4
      %s2013 = int_to_ptr.vmem [resolvable:$true] %s2012
      %2018 = dma.vmem_to_hbm [thread:$0]  %s2013, 1024, %s3, [#allocation5], 128, 128, 8
    $region29: #{tpu_custom_call.1} parent=1 // pred_fallthru
      _
    // Predicated region
    $region30: #{tpu_custom_call.1} parent=1 // pred_check
      _
    $region31: #{tpu_custom_call.1} parent=1 // pred_check_branch
      %2020 = sbr.rel (0) target = $region33
    $region32: #{tpu_custom_call.1} parent=1 // pred_region
      %2021 = dma.done [#allocation5], 1024
    $region33: #{tpu_custom_call.1} parent=1 // pred_fallthru
      _
    %2022 = vsyncpa [#allocation4], 1
    %2023 = vsyncpa [#allocation7], 1
    %2024 = vsyncpa [#allocation5], 1

</llo_original>
